<compile_context>
chip_gen: v7x
topology: tpu7x:2x2x1
jax: 0.10.0
libtpu: 0.0.40
codegen_flags: <defaults>
</compile_context>

<pallas_src>
import jax
import jax.numpy as jnp
from jax.experimental import pallas as pl
from jax.experimental.pallas import tpu as pltpu


def _bahdanau_kernel(enc_ref, w2h_ref, w1t_ref, v_ref, bv_ref, ctx_ref, attn_ref):
    bt, S, H = enc_ref.shape
    enc = enc_ref[...]                                       # (bt, S, H)

    # W1(enc): one big MXU matmul over the whole batch tile.
    w1e = jnp.dot(enc.reshape(bt * S, H), w1t_ref[...],
                  preferred_element_type=jnp.float32).reshape(bt, S, H)

    # W2(hidden) + b1 + b2 was precomputed in the wrapper; broadcast over seq.
    t = jnp.tanh(w1e + w2h_ref[...][:, None, :])             # (bt, S, H)

    # V projection on VPU (mul) + XLU (lane reduce); avoids an N=1 MXU matmul.
    score = jnp.sum(t * v_ref[...], axis=-1) + bv_ref[...]   # (bt, S)

    # Softmax over the sequence axis (== lane axis here -> lane-dense stores).
    m = jnp.max(score, axis=-1, keepdims=True)
    e = jnp.exp(score - m)
    # Denominator is only (bt, 1) elements, so exact reciprocal is already
    # cheap; approx=True (EUP slot) is available if test tolerances are relaxed.
    attn = e * pl.reciprocal(jnp.sum(e, axis=-1, keepdims=True), approx=False)
    attn_ref[...] = attn                                     # (bt, S) lane-dense

    # context[b, h] = sum_s attn[b, s] * enc[b, s, h]  (VPU mul + sublane reduce)
    ctx_ref[...] = jnp.sum(attn[:, :, None] * enc, axis=1)   # (bt, H)


def _pick_b_tile(B, S, H, itemsize=4, vmem_budget=4 << 20):
    """Largest batch tile that (a) divides B, (b) keeps (b_tile, .) output
    blocks sublane-aligned (multiple of 8, or the full batch), (c) keeps the
    double-buffered encoder block within a small VMEM budget, and (d) when
    possible leaves >= 2 grid steps so v7x's two TensorCores both get work."""
    cands = [d for d in range(1, B + 1)
             if B % d == 0 and (d % 8 == 0 or d == B)]
    fits = [d for d in cands if 2 * d * S * H * itemsize <= vmem_budget]
    if not fits:
        fits = [min(cands)]
    multi = [d for d in fits if B // d >= 2]
    return max(multi) if multi else max(fits)


def bahdanau_attention(hidden, encoder_outputs, params, *, b_tile=None):
    """hidden: (B, H) f32, encoder_outputs: (B, S, H) f32.

    params: PyTorch-convention Linear params:
      w1 (H, H), b1 (H,), w2 (H, H), b2 (H,), v (1, H), bv (1,)
    Returns (context (B, H), attention_weights (B, S, 1)).
    """
    B, S, H = encoder_outputs.shape
    if b_tile is None:
        b_tile = _pick_b_tile(B, S, H, encoder_outputs.dtype.itemsize)
    assert B % b_tile == 0

    # Hoisted out of the kernel: W2(hidden) as one dense XLA matmul, with both
    # Linear biases folded into it (w1e + b1 + w2h + b2 == w1e + (w2h+b1+b2)).
    w2h = hidden @ params["w2"].T + (params["b1"] + params["b2"])   # (B, H)
    w1t = params["w1"].T                                            # (H, H)
    v_row = params["v"].reshape(1, H)                               # (1, H)
    bv = params["bv"].reshape(1, 1)                                 # (1, 1)
    # NOTE: for v6e/v7x, casting enc/w1t/v_row to bf16 (keeping f32 accumulate)
    # would roughly double MXU throughput and halve HBM traffic, at the cost of
    # looser tolerances; kept f32 here to hold the tight reference check.

    grid_spec = pltpu.PrefetchScalarGridSpec(
        num_scalar_prefetch=0,
        grid=(B // b_tile,),
        in_specs=[
            pl.BlockSpec((b_tile, S, H), lambda i: (i, 0, 0)),   # encoder_outputs
            pl.BlockSpec((b_tile, H), lambda i: (i, 0)),         # W2(h) + b1 + b2
            pl.BlockSpec((H, H), lambda i: (0, 0)),              # W1^T (resident)
            pl.BlockSpec((1, H), lambda i: (0, 0)),              # V row vector
            pl.BlockSpec((1, 1), lambda i: (0, 0)),              # V bias
        ],
        out_specs=[
            pl.BlockSpec((b_tile, H), lambda i: (i, 0)),         # context
            pl.BlockSpec((b_tile, S), lambda i: (i, 0)),         # attn (lane-dense)
        ],
    )

    ctx, attn = pl.pallas_call(
        _bahdanau_kernel,
        out_shape=(
            jax.ShapeDtypeStruct((B, H), jnp.float32),
            jax.ShapeDtypeStruct((B, S), jnp.float32),
        ),
        grid_spec=grid_spec,
        compiler_params=pltpu.CompilerParams(
            dimension_semantics=("parallel",)),
    )(encoder_outputs, w2h, w1t, v_row, bv)

    # Match the PyTorch output layout: attention weights as (B, S, 1).
    return ctx, attn.reshape(B, S, 1)


def _reference(hidden, encoder_outputs, params):
    w1e = encoder_outputs @ params["w1"].T + params["b1"]
    w2h = hidden[:, None, :] @ params["w2"].T + params["b2"]
    score = jnp.tanh(w1e + w2h) @ params["v"].T + params["bv"]      # (B, S, 1)
    attn = jax.nn.softmax(score, axis=1)
    ctx = jnp.sum(attn * encoder_outputs, axis=1)
    return ctx, attn


if __name__ == "__main__":
    # Small shapes: H on the lane axis; b_tile=32 -> 256-row W1 matmul, grid=2.
    B, S, H = 64, 8, 128

    key = jax.random.PRNGKey(0)
    k_hid, k_enc, k_w1, k_b1, k_w2, k_b2, k_v, k_bv = jax.random.split(key, 8)

    hidden = jax.random.normal(k_hid, (B, H), dtype=jnp.float32)
    encoder_outputs = jax.random.normal(k_enc, (B, S, H), dtype=jnp.float32)

    scale = 1.0 / jnp.sqrt(jnp.float32(H))
    params = {
        "w1": jax.random.normal(k_w1, (H, H), dtype=jnp.float32) * scale,
        "b1": jax.random.normal(k_b1, (H,), dtype=jnp.float32) * scale,
        "w2": jax.random.normal(k_w2, (H, H), dtype=jnp.float32) * scale,
        "b2": jax.random.normal(k_b2, (H,), dtype=jnp.float32) * scale,
        "v": jax.random.normal(k_v, (1, H), dtype=jnp.float32) * scale,
        "bv": jax.random.normal(k_bv, (1,), dtype=jnp.float32) * scale,
    }

    ctx, attn = bahdanau_attention(hidden, encoder_outputs, params)
    jax.block_until_ready((ctx, attn))

    ctx_ref, attn_ref = _reference(hidden, encoder_outputs, params)
    assert ctx.shape == (B, H) and attn.shape == (B, S, 1)
    assert jnp.allclose(ctx, ctx_ref, atol=2e-4, rtol=2e-4), "context mismatch"
    assert jnp.allclose(attn, attn_ref, atol=1e-4, rtol=1e-4), "attn mismatch"

    print("KERNEL_OK")
</pallas_src>

<mosaic_0001>
module attributes {stable_mosaic.version = 11 : i64} {
  func.func @_bahdanau_kernel(%arg0: i32, %arg1: memref<32x8x128xf32, #tpu.memory_space<vmem>>, %arg2: memref<32x128xf32, #tpu.memory_space<vmem>>, %arg3: memref<128x128xf32, #tpu.memory_space<vmem>>, %arg4: memref<1x128xf32, #tpu.memory_space<vmem>>, %arg5: memref<1x1xf32, #tpu.memory_space<vmem>>, %arg6: memref<32x128xf32, #tpu.memory_space<vmem>>, %arg7: memref<32x8xf32, #tpu.memory_space<vmem>>) attributes {dimension_semantics = [#tpu.dimension_semantics<parallel>], iteration_bounds = array<i64: 2>, scalar_prefetch = 0 : i64, scratch_operands = 0 : i64, tpu.core_type = #tpu.core_type<tc>, window_params = [{transform_indices = @transform_0, window_bounds = array<i64: 32, 8, 128>}, {transform_indices = @transform_1, window_bounds = array<i64: 32, 128>}, {pipeline_mode = #tpu.pipeline_mode<synchronous>, transform_indices = @transform_2, window_bounds = array<i64: 128, 128>}, {pipeline_mode = #tpu.pipeline_mode<synchronous>, transform_indices = @transform_3, window_bounds = array<i64: 1, 128>}, {pipeline_mode = #tpu.pipeline_mode<synchronous>, transform_indices = @transform_4, window_bounds = array<i64: 1, 1>}, {transform_indices = @transform_5, window_bounds = array<i64: 32, 128>}, {transform_indices = @transform_6, window_bounds = array<i64: 32, 8>}]} {
    %c0 = arith.constant 0 : index
    %c0_0 = arith.constant 0 : index
    %c0_1 = arith.constant 0 : index
    %0 = vector.load %arg1[%c0, %c0_0, %c0_1] : memref<32x8x128xf32, #tpu.memory_space<vmem>>, vector<32x8x128xf32>
    %1 = vector.shape_cast %0 : vector<32x8x128xf32> to vector<256x128xf32>
    %c0_2 = arith.constant 0 : index
    %c0_3 = arith.constant 0 : index
    %2 = vector.load %arg3[%c0_2, %c0_3] : memref<128x128xf32, #tpu.memory_space<vmem>>, vector<128x128xf32>
    %cst = arith.constant dense<0.000000e+00> : vector<256x128xf32>
    %3 = tpu.matmul %1, %2, %cst {dimension_numbers = #tpu.dot_dimension_numbers<[1], [0], [0], [1], [0, 0, 1, 1], [], []>} : vector<256x128xf32>, vector<128x128xf32>, vector<256x128xf32> -> vector<256x128xf32>
    %4 = vector.shape_cast %3 : vector<256x128xf32> to vector<32x8x128xf32>
    %c0_4 = arith.constant 0 : index
    %c0_5 = arith.constant 0 : index
    %5 = vector.load %arg2[%c0_4, %c0_5] : memref<32x128xf32, #tpu.memory_space<vmem>>, vector<32x128xf32>
    %6 = vector.shape_cast %5 : vector<32x128xf32> to vector<32x1x128xf32>
    %7 = vector.broadcast %6 : vector<32x1x128xf32> to vector<32x8x128xf32>
    %8 = arith.addf %4, %7 : vector<32x8x128xf32>
    %9 = math.tanh %8 : vector<32x8x128xf32>
    %c0_6 = arith.constant 0 : index
    %c0_7 = arith.constant 0 : index
    %10 = vector.load %arg4[%c0_6, %c0_7] : memref<1x128xf32, #tpu.memory_space<vmem>>, vector<1x128xf32>
    %11 = vector.shape_cast %10 : vector<1x128xf32> to vector<1x1x128xf32>
    %12 = vector.broadcast %11 : vector<1x1x128xf32> to vector<32x8x128xf32>
    %13 = arith.mulf %9, %12 : vector<32x8x128xf32>
    %cst_8 = arith.constant dense<0.000000e+00> : vector<32x8xf32>
    %14 = vector.multi_reduction <add>, %13, %cst_8 [2] : vector<32x8x128xf32> to vector<32x8xf32>
    %c0_9 = arith.constant 0 : index
    %c0_10 = arith.constant 0 : index
    %15 = vector.load %arg5[%c0_9, %c0_10] : memref<1x1xf32, #tpu.memory_space<vmem>>, vector<1x1xf32>
    %16 = vector.broadcast %15 : vector<1x1xf32> to vector<32x8xf32>
    %17 = arith.addf %14, %16 : vector<32x8xf32>
    %cst_11 = arith.constant dense<0xFF800000> : vector<32xf32>
    %18 = vector.multi_reduction <maximumf>, %17, %cst_11 [1] : vector<32x8xf32> to vector<32xf32>
    %19 = vector.shape_cast %18 : vector<32xf32> to vector<32x1xf32>
    %20 = vector.broadcast %19 : vector<32x1xf32> to vector<32x8xf32>
    %21 = arith.subf %17, %20 : vector<32x8xf32>
    %22 = math.exp %21 : vector<32x8xf32>
    %cst_12 = arith.constant dense<0.000000e+00> : vector<32xf32>
    %23 = vector.multi_reduction <add>, %22, %cst_12 [1] : vector<32x8xf32> to vector<32xf32>
    %24 = vector.shape_cast %23 : vector<32xf32> to vector<32x1xf32>
    %25 = tpu.reciprocal %24 : vector<32x1xf32> -> vector<32x1xf32>
    %26 = vector.broadcast %25 : vector<32x1xf32> to vector<32x8xf32>
    %27 = arith.mulf %22, %26 : vector<32x8xf32>
    %c0_13 = arith.constant 0 : index
    %c0_14 = arith.constant 0 : index
    %28 = vector.load %arg7[%c0_13, %c0_14] : memref<32x8xf32, #tpu.memory_space<vmem>>, vector<32x8xf32>
    tpu.vector_store %arg7[%c0_13, %c0_14], %27 {strides = array<i32>} : memref<32x8xf32, #tpu.memory_space<vmem>>, vector<32x8xf32>,
    %29 = vector.shape_cast %27 : vector<32x8xf32> to vector<32x8x1xf32>
    %30 = vector.broadcast %29 : vector<32x8x1xf32> to vector<32x8x128xf32>
    %31 = arith.mulf %30, %0 : vector<32x8x128xf32>
    %cst_15 = arith.constant dense<0.000000e+00> : vector<32x128xf32>
    %32 = vector.multi_reduction <add>, %31, %cst_15 [1] : vector<32x8x128xf32> to vector<32x128xf32>
    %c0_16 = arith.constant 0 : index
    %c0_17 = arith.constant 0 : index
    %33 = vector.load %arg6[%c0_16, %c0_17] : memref<32x128xf32, #tpu.memory_space<vmem>>, vector<32x128xf32>
    tpu.vector_store %arg6[%c0_16, %c0_17], %32 {strides = array<i32>} : memref<32x128xf32, #tpu.memory_space<vmem>>, vector<32x128xf32>,
    return
  }
  func.func @transform_0(%arg0: i32) -> (i32, i32, i32) {
    %c0_i32 = arith.constant 0 : i32
    %c0_i32_0 = arith.constant 0 : i32
    %c0_i32_1 = arith.constant 0 : i32
    return %arg0, %c0_i32, %c0_i32_0 : i32, i32, i32
  }
  func.func @transform_1(%arg0: i32) -> (i32, i32) {
    %c0_i32 = arith.constant 0 : i32
    %c0_i32_0 = arith.constant 0 : i32
    return %arg0, %c0_i32 : i32, i32
  }
  func.func @transform_2(%arg0: i32) -> (i32, i32) {
    %c0_i32 = arith.constant 0 : i32
    %c0_i32_0 = arith.constant 0 : i32
    %c0_i32_1 = arith.constant 0 : i32
    return %c0_i32, %c0_i32_0 : i32, i32
  }
  func.func @transform_3(%arg0: i32) -> (i32, i32) {
    %c0_i32 = arith.constant 0 : i32
    %c0_i32_0 = arith.constant 0 : i32
    %c0_i32_1 = arith.constant 0 : i32
    return %c0_i32, %c0_i32_0 : i32, i32
  }
  func.func @transform_4(%arg0: i32) -> (i32, i32) {
    %c0_i32 = arith.constant 0 : i32
    %c0_i32_0 = arith.constant 0 : i32
    %c0_i32_1 = arith.constant 0 : i32
    return %c0_i32, %c0_i32_0 : i32, i32
  }
  func.func @transform_5(%arg0: i32) -> (i32, i32) {
    %c0_i32 = arith.constant 0 : i32
    %c0_i32_0 = arith.constant 0 : i32
    return %arg0, %c0_i32 : i32, i32
  }
  func.func @transform_6(%arg0: i32) -> (i32, i32) {
    %c0_i32 = arith.constant 0 : i32
    %c0_i32_0 = arith.constant 0 : i32
    return %arg0, %c0_i32 : i32, i32
  }
}

</mosaic_0001>

<llo_original>
// kernel: tpu_custom_call.1
$region0: #{tpu_custom_call.1}
  #allocation0 [shape = 'u32[]', space=smem, size = 0x4, offset = 0x4, fixed_abs, tag = 'smem constant byte address 0x4 - core index']
  #allocation1 [shape = 'u32[144,128]{1,0:T(1,128)}', space=vmem, size = 0x12000, scoped, tag = 'internal scratch']
  #allocation2 [shape = 'f32[1,1]{1,0:T(1,128)S(1)}', space=vmem, size = 0x200, scoped, tag = 'scoped memory for tpu_custom_call.1']
  %s0 = inlined_call_operand.hbm [shape: f32[64,8,128], index: 0, kind: input, shape index: {}]
  %s1 = inlined_call_operand.hbm [shape: f32[64,128], index: 1, kind: input, shape index: {}]
  %s2 = inlined_call_operand.hbm [shape: f32[128,128], index: 2, kind: input, shape index: {}]
  %s3 = inlined_call_operand.vmem [shape: f32[1,128], index: 3, kind: input, shape index: {}]
  %s4 = inlined_call_operand.<no memory space> [shape: f32[1,1], index: 4, kind: input, shape index: {}]
  %s5 = inlined_call_operand.hbm [shape: f32[64,128], index: 5, kind: output, shape index: {0}]
  %s6 = inlined_call_operand.vmem [shape: f32[64,8], index: 6, kind: output, shape index: {1}]
  %7 = xla_tuple %s5, %s6
  %s8 = sld [smem:[#allocation0]]
  $region73: #{tpu_custom_call.1} parent=0
    _
  %s10 = ssub.s32 1, %s8
  %s11 = scalar_select 0, %s10, %s8
  %v12 = vstv %s4
  %13 = vst [vmem:[#allocation2] sm:$0x1] %v12
  $region1: #{tpu_custom_call.1} parent=0
    #allocation3 [shape = 'u8[262144]{0}', space=vmem, size = 0x40000, scoped, tag = 'input window, operand 0']
    #allocation4 [shape = 's32[2]{0}', space=sflag, size = 0x8, scoped, tag = 'scoped memory for tpu_custom_call.1']
    #allocation5 [shape = 's32[2]{0}', space=sflag, size = 0x8, scoped, tag = 'scoped memory for tpu_custom_call.1']
    #allocation6 [shape = 'u8[32768]{0}', space=vmem, size = 0x8000, scoped, tag = 'input window, operand 1']
    #allocation7 [shape = 's32[2]{0}', space=sflag, size = 0x8, scoped, tag = 'scoped memory for tpu_custom_call.1']
    #allocation8 [shape = 'u8[65536]{0}', space=vmem, size = 0x10000, scoped, tag = 'input window, operand 2, single buffered']
    #allocation9 [shape = 'u8[32768]{0}', space=vmem, size = 0x8000, scoped, tag = 'output window, operand 0']
    %14 = vsyncpa [#allocation4], 0
    %s15 = scalar_lea.sflag [#allocation4], 1
    %16 = vsyncpa %s15, 0
    %17 = vsyncpa [#allocation7], 0
    %s18 = scalar_lea.sflag [#allocation7], 1
    %19 = vsyncpa %s18, 0
    %20 = vsyncpa [#allocation5], 0
    %s21 = scalar_lea.sflag [#allocation5], 1
    %22 = vsyncpa %s21, 0
    loop: start=0, step=1, limit=4
    $region2: #{tpu_custom_call.1} parent=1 // loop_pre_header
      _
    $region3: #{tpu_custom_call.1} parent=1 // loop_header
      %s24 = sphi 0, %s28
      %p25 = scmp.ge.s32.totalorder %s24, 4
      %s34 = sphi 0, %s36
      %s37 = sphi 0, %s34
      %s38 = sphi 0, %s37
      %s54 = sphi 0, %s38
      %s60 = sphi 0, %s62
      %s63 = sphi 0, %s60
      %s64 = sphi 0, %s63
      %s80 = sphi 0, %s64
      %s84 = sphi 0, %s84
      %s86 = sphi 0, %s84
      %s87 = sphi 0, %s86
      %s101 = sphi 0, %s87
      %s105 = sphi 0, %s105
      %s107 = sphi 0, %s105
      %s108 = sphi 0, %s107
      %s122 = sphi 0, %s108
      %s126 = sphi 0, %s126
      %s128 = sphi 0, %s126
      %s129 = sphi 0, %s128
      %s143 = sphi 0, %s129
      %s149 = sphi 0, %s151
      %s152 = sphi 0, %s149
      %s153 = sphi 0, %s152
      %s169 = sphi 0, %s153
      %s175 = sphi 0, %s177
      %s178 = sphi 0, %s175
      %s179 = sphi 0, %s178
      %s195 = sphi 0, %s179
    $region4: #{tpu_custom_call.1} parent=1 // loop_header_branch
      %27 = sbr.rel (%p25) target = $region8
    $region5: #{tpu_custom_call.1} parent=1 // loop_body
      %s29 = ssub.s32 %s24, 1
      %s30 = ssub.s32 %s24, 2
      %s31 = sadd.s32 %s24, 1
      %s32 = ssub.s32 %s24, %s31
      %p33 = scmp.eq.s32.totalorder %s32, 0
      %s35 = sadd.s32 %s34, 1
      %s36 = scalar_select %p33, %s34, %s35
      %p39 = pneg %p33
      %p40 = scmp.eq.s32.totalorder %s24, 1
      %p41 = por %p39, %p40
      %p42 = scmp.ne.s32.totalorder %s34, %s37
      %p43 = scmp.eq.s32.totalorder %s24, 0
      %p44 = por %p42, %p43
      %p45 = scmp.ne.s32.totalorder %s34, %s37
      %p46 = scmp.eq.s32.totalorder %s29, 1
      %p47 = por %p45, %p46
      %p48 = scmp.ne.s32.totalorder %s37, %s38
      %p49 = scmp.eq.s32.totalorder %s29, 0
      %p50 = por %p48, %p49
      %p51 = scmp.ne.s32.totalorder %s37, %s38
      %p52 = scmp.eq.s32.totalorder %s30, 1
      %p53 = por %p51, %p52
      %p55 = scmp.ne.s32.totalorder %s38, %s54
      %p56 = scmp.eq.s32.totalorder %s30, 0
      %p57 = por %p55, %p56
      %s58 = ssub.s32 %s24, %s31
      %p59 = scmp.eq.s32.totalorder %s58, 0
      %s61 = sadd.s32 %s60, 1
      %s62 = scalar_select %p59, %s60, %s61
      %p65 = pneg %p59
      %p66 = scmp.eq.s32.totalorder %s24, 1
      %p67 = por %p65, %p66
      %p68 = scmp.ne.s32.totalorder %s60, %s63
      %p69 = scmp.eq.s32.totalorder %s24, 0
      %p70 = por %p68, %p69
      %p71 = scmp.ne.s32.totalorder %s60, %s63
      %p72 = scmp.eq.s32.totalorder %s29, 1
      %p73 = por %p71, %p72
      %p74 = scmp.ne.s32.totalorder %s63, %s64
      %p75 = scmp.eq.s32.totalorder %s29, 0
      %p76 = por %p74, %p75
      %p77 = scmp.ne.s32.totalorder %s63, %s64
      %p78 = scmp.eq.s32.totalorder %s30, 1
      %p79 = por %p77, %p78
      %p81 = scmp.ne.s32.totalorder %s64, %s80
      %p82 = scmp.eq.s32.totalorder %s30, 0
      %p83 = por %p81, %p82
      %s85 = sadd.s32 %s84, 1
      %p88 = scmp.eq.s32.totalorder %s24, 1
      %p89 = scmp.ne.s32.totalorder %s84, %s86
      %p90 = scmp.eq.s32.totalorder %s24, 0
      %p91 = por %p89, %p90
      %p92 = scmp.ne.s32.totalorder %s84, %s86
      %p93 = scmp.eq.s32.totalorder %s29, 1
      %p94 = por %p92, %p93
      %p95 = scmp.ne.s32.totalorder %s86, %s87
      %p96 = scmp.eq.s32.totalorder %s29, 0
      %p97 = por %p95, %p96
      %p98 = scmp.ne.s32.totalorder %s86, %s87
      %p99 = scmp.eq.s32.totalorder %s30, 1
      %p100 = por %p98, %p99
      %p102 = scmp.ne.s32.totalorder %s87, %s101
      %p103 = scmp.eq.s32.totalorder %s30, 0
      %p104 = por %p102, %p103
      %s106 = sadd.s32 %s105, 1
      %p109 = scmp.eq.s32.totalorder %s24, 1
      %p110 = scmp.ne.s32.totalorder %s105, %s107
      %p111 = scmp.eq.s32.totalorder %s24, 0
      %p112 = por %p110, %p111
      %p113 = scmp.ne.s32.totalorder %s105, %s107
      %p114 = scmp.eq.s32.totalorder %s29, 1
      %p115 = por %p113, %p114
      %p116 = scmp.ne.s32.totalorder %s107, %s108
      %p117 = scmp.eq.s32.totalorder %s29, 0
      %p118 = por %p116, %p117
      %p119 = scmp.ne.s32.totalorder %s107, %s108
      %p120 = scmp.eq.s32.totalorder %s30, 1
      %p121 = por %p119, %p120
      %p123 = scmp.ne.s32.totalorder %s108, %s122
      %p124 = scmp.eq.s32.totalorder %s30, 0
      %p125 = por %p123, %p124
      %s127 = sadd.s32 %s126, 1
      %p130 = scmp.eq.s32.totalorder %s24, 1
      %p131 = scmp.ne.s32.totalorder %s126, %s128
      %p132 = scmp.eq.s32.totalorder %s24, 0
      %p133 = por %p131, %p132
      %p134 = scmp.ne.s32.totalorder %s126, %s128
      %p135 = scmp.eq.s32.totalorder %s29, 1
      %p136 = por %p134, %p135
      %p137 = scmp.ne.s32.totalorder %s128, %s129
      %p138 = scmp.eq.s32.totalorder %s29, 0
      %p139 = por %p137, %p138
      %p140 = scmp.ne.s32.totalorder %s128, %s129
      %p141 = scmp.eq.s32.totalorder %s30, 1
      %p142 = por %p140, %p141
      %p144 = scmp.ne.s32.totalorder %s129, %s143
      %p145 = scmp.eq.s32.totalorder %s30, 0
      %p146 = por %p144, %p145
      %s147 = ssub.s32 %s24, %s31
      %p148 = scmp.eq.s32.totalorder %s147, 0
      %s150 = sadd.s32 %s149, 1
      %s151 = scalar_select %p148, %s149, %s150
      %p154 = pneg %p148
      %p155 = scmp.eq.s32.totalorder %s24, 1
      %p156 = por %p154, %p155
      %p157 = scmp.ne.s32.totalorder %s149, %s152
      %p158 = scmp.eq.s32.totalorder %s24, 0
      %p159 = por %p157, %p158
      %p160 = scmp.ne.s32.totalorder %s149, %s152
      %p161 = scmp.eq.s32.totalorder %s29, 1
      %p162 = por %p160, %p161
      %p163 = scmp.ne.s32.totalorder %s152, %s153
      %p164 = scmp.eq.s32.totalorder %s29, 0
      %p165 = por %p163, %p164
      %p166 = scmp.ne.s32.totalorder %s152, %s153
      %p167 = scmp.eq.s32.totalorder %s30, 1
      %p168 = por %p166, %p167
      %p170 = scmp.ne.s32.totalorder %s153, %s169
      %p171 = scmp.eq.s32.totalorder %s30, 0
      %p172 = por %p170, %p171
      %s173 = ssub.s32 %s24, %s31
      %p174 = scmp.eq.s32.totalorder %s173, 0
      %s176 = sadd.s32 %s175, 1
      %s177 = scalar_select %p174, %s175, %s176
      %p180 = pneg %p174
      %p181 = scmp.eq.s32.totalorder %s24, 1
      %p182 = por %p180, %p181
      %p183 = scmp.ne.s32.totalorder %s175, %s178
      %p184 = scmp.eq.s32.totalorder %s24, 0
      %p185 = por %p183, %p184
      %p186 = scmp.ne.s32.totalorder %s175, %s178
      %p187 = scmp.eq.s32.totalorder %s29, 1
      %p188 = por %p186, %p187
      %p189 = scmp.ne.s32.totalorder %s178, %s179
      %p190 = scmp.eq.s32.totalorder %s29, 0
      %p191 = por %p189, %p190
      %p192 = scmp.ne.s32.totalorder %s178, %s179
      %p193 = scmp.eq.s32.totalorder %s30, 1
      %p194 = por %p192, %p193
      %p196 = scmp.ne.s32.totalorder %s179, %s195
      %p197 = scmp.eq.s32.totalorder %s30, 0
      %p198 = por %p196, %p197
      %p199 = scmp.le.s32.totalorder 1, %s24
      %p200 = scmp.lt.s32.totalorder %s24, 3
      %p201 = pnand %p199, %p200
      %p202 = pneg %p201
      // Predicated region
      $region9: #{tpu_custom_call.1} parent=5 // pred_check
        _
      $region10: #{tpu_custom_call.1} parent=5 // pred_check_branch
        %204 = sbr.rel (%p201) target = $region12
      $region11: #{tpu_custom_call.1} parent=5 // pred_region
        %s205 = ssub.s32 %s24, 1
        // Predicated region
        $region13: #{tpu_custom_call.1} parent=11 // pred_check
          %p206 = pneg %p97
        $region14: #{tpu_custom_call.1} parent=11 // pred_check_branch
          %208 = sbr.rel (%p206) target = $region16
        $region15: #{tpu_custom_call.1} parent=11 // pred_region
          %s210 = ssub.s32 2048, 2048
          %211 = vsyncadd [#allocation7], %s210
          %s212 = sshll.u32 [#allocation8], 4
          %s213 = int_to_ptr.vmem [resolvable:$true] %s212
          %218 = dma.hbm_to_vmem [thread:$0]  %s2, 2048, %s213, [#allocation7], 128, 128, 8
        $region16: #{tpu_custom_call.1} parent=11 // pred_fallthru
          _
        // Predicated region
        $region17: #{tpu_custom_call.1} parent=11 // pred_check
          %p219 = pneg %p118
        $region18: #{tpu_custom_call.1} parent=11 // pred_check_branch
          %221 = sbr.rel (%p219) target = $region20
        $region19: #{tpu_custom_call.1} parent=11 // pred_region
          _
        $region20: #{tpu_custom_call.1} parent=11 // pred_fallthru
          _
        // Predicated region
        $region21: #{tpu_custom_call.1} parent=11 // pred_check
          %p222 = pneg %p139
        $region22: #{tpu_custom_call.1} parent=11 // pred_check_branch
          %224 = sbr.rel (%p222) target = $region24
        $region23: #{tpu_custom_call.1} parent=11 // pred_region
          _
        $region24: #{tpu_custom_call.1} parent=11 // pred_fallthru
          _
      $region12: #{tpu_custom_call.1} parent=5 // pred_fallthru
        _
      %p225 = scmp.lt.s32.totalorder %s24, 2
      // Predicated region
      $region25: #{tpu_custom_call.1} parent=5 // pred_check
        %p226 = pneg %p225
      $region26: #{tpu_custom_call.1} parent=5 // pred_check_branch
        %228 = sbr.rel (%p226) target = $region28
      $region27: #{tpu_custom_call.1} parent=5 // pred_region
        // Predicated region
        $region29: #{tpu_custom_call.1} parent=27 // pred_check
          %p229 = pneg %p44
        $region30: #{tpu_custom_call.1} parent=27 // pred_check_branch
          %231 = sbr.rel (%p229) target = $region32
        $region31: #{tpu_custom_call.1} parent=27 // pred_region
          %s232 = sand.u32 %s34, 1
          %s233 = scalar_lea.sflag [#allocation4], %s232
          %s234 = sand.u32 %s34, 1
          %s235 = smul.addr %s234, 256
          %s236 = scalar_lea.vmem [#allocation3], %s235
          %s237 = smul.u32 32, %s24
          %s239 = ssub.s32 4096, 4096
          %240 = vsyncadd %s233, %s239
          %s241 = smul.addr %s237, 128
          %s242 = scalar_lea.hbm %s0, %s241
          %s243 = sshll.u32 %s236, 4
          %s244 = int_to_ptr.vmem [resolvable:$true] %s243
          %249 = dma.hbm_to_vmem [thread:$0]  %s242, 4096, %s244, %s233, 128, 128, 8
        $region32: #{tpu_custom_call.1} parent=27 // pred_fallthru
          _
        // Predicated region
        $region33: #{tpu_custom_call.1} parent=27 // pred_check
          %p250 = pneg %p70
        $region34: #{tpu_custom_call.1} parent=27 // pred_check_branch
          %252 = sbr.rel (%p250) target = $region36
        $region35: #{tpu_custom_call.1} parent=27 // pred_region
          %s253 = sand.u32 %s24, 1
          %s254 = scalar_lea.sflag [#allocation7], %s253
          %s255 = sand.u32 %s60, 1
          %s256 = smul.addr %s255, 32
          %s257 = scalar_lea.vmem [#allocation6], %s256
          %s258 = smul.u32 4, %s24
          %s260 = ssub.s32 512, 512
          %261 = vsyncadd %s254, %s260
          %s262 = smul.addr %s258, 128
          %s263 = scalar_lea.hbm %s1, %s262
          %s264 = sshll.u32 %s257, 4
          %s265 = int_to_ptr.vmem [resolvable:$true] %s264
          %270 = dma.hbm_to_vmem [thread:$0]  %s263, 512, %s265, %s254, 128, 128, 8
        $region36: #{tpu_custom_call.1} parent=27 // pred_fallthru
          _
      $region28: #{tpu_custom_call.1} parent=5 // pred_fallthru
        _
      %p271 = scmp.le.s32.totalorder 1, %s24
      %p272 = scmp.lt.s32.totalorder %s24, 3
      %p273 = pnand %p271, %p272
      %p274 = pneg %p273
      // Predicated region
      $region37: #{tpu_custom_call.1} parent=5 // pred_check
        _
      $region38: #{tpu_custom_call.1} parent=5 // pred_check_branch
        %276 = sbr.rel (%p273) target = $region40
      $region39: #{tpu_custom_call.1} parent=5 // pred_region
        %s277 = ssub.s32 %s24, 1
        %s278 = sand.u32 %s37, 1
        %s279 = scalar_lea.sflag [#allocation4], %s278
        %s280 = sand.u32 %s37, 1
        %s281 = smul.addr %s280, 256
        %s282 = scalar_lea.vmem [#allocation3], %s281
        // Predicated region
        $region41: #{tpu_custom_call.1} parent=39 // pred_check
          %p283 = pneg %p50
        $region42: #{tpu_custom_call.1} parent=39 // pred_check_branch
          %285 = sbr.rel (%p283) target = $region44
        $region43: #{tpu_custom_call.1} parent=39 // pred_region
          %286 = dma.done %s279, 4096
        $region44: #{tpu_custom_call.1} parent=39 // pred_fallthru
          _
        %s287 = sand.u32 %s29, 1
        %s288 = scalar_lea.sflag [#allocation7], %s287
        %s289 = sand.u32 %s63, 1
        %s290 = smul.addr %s289, 32
        %s291 = scalar_lea.vmem [#allocation6], %s290
        // Predicated region
        $region45: #{tpu_custom_call.1} parent=39 // pred_check
          %p292 = pneg %p76
        $region46: #{tpu_custom_call.1} parent=39 // pred_check_branch
          %294 = sbr.rel (%p292) target = $region48
        $region47: #{tpu_custom_call.1} parent=39 // pred_region
          %295 = dma.done %s288, 512
        $region48: #{tpu_custom_call.1} parent=39 // pred_fallthru
          _
        // Predicated region
        $region49: #{tpu_custom_call.1} parent=39 // pred_check
          %p296 = pneg %p97
        $region50: #{tpu_custom_call.1} parent=39 // pred_check_branch
          %298 = sbr.rel (%p296) target = $region52
        $region51: #{tpu_custom_call.1} parent=39 // pred_region
          %299 = dma.done [#allocation7], 2048
        $region52: #{tpu_custom_call.1} parent=39 // pred_fallthru
          _
        %s300 = sand.u32 %s37, 1
        %s301 = scalar_lea.sflag [#allocation4], %s300
        %s302 = sand.u32 %s37, 1
        %s303 = smul.addr %s302, 256
        %s304 = scalar_lea.vmem [#allocation3], %s303
        %p305 = pneg %p50
        %p306 = pneg %p47
        %s307 = sand.u32 %s29, 1
        %s308 = scalar_lea.sflag [#allocation7], %s307
        %s309 = sand.u32 %s63, 1
        %s310 = smul.addr %s309, 32
        %s311 = scalar_lea.vmem [#allocation6], %s310
        %p312 = pneg %p76
        %p313 = pneg %p73
        %p314 = pneg %p97
        %p315 = pneg %p94
        %p316 = pneg %p118
        %p317 = pneg %p115
        %p318 = pneg %p139
        %p319 = pneg %p136
        %p320 = pneg %p165
        %p321 = pneg %p162
        %s322 = sand.u32 %s152, 1
        %s323 = scalar_lea.sflag [#allocation5], %s322
        %s324 = sand.u32 %s152, 1
        %s325 = smul.addr %s324, 32
        %s326 = scalar_lea.vmem [#allocation9], %s325
        %p327 = pneg %p191
        %p328 = pneg %p188
        %s329 = smul.u32 4, %s29
        %p330 = scmp.lt.s32.totalorder %s329, 7
        %s331 = scalar_select %p330, %s329, 7
        %s332 = smul.addr %s331, 8
        %s333 = scalar_lea.vmem %s6, %s332
        %s334 = smul.u32 32, %s29
        %s335 = smul.u32 4, %s29
        %s336 = smul.u32 4, %s29
        %s337 = smul.u32 4, %s29
        %p338 = scmp.lt.s32.totalorder %s337, 7
        %s339 = scalar_select %p338, %s337, 7
        %s340 = smul.addr %s339, 8
        %s341 = scalar_lea.vmem %s6, %s340
        %s342 = smul.u32 4, %s29
        %v343 = vld [vmem:[%s282] sm:$0xff]
        %v344 = vld [vmem:[%s282 + $0x8] sm:$0xff]
        %v345 = vld [vmem:[%s282 + $0x10] sm:$0xff]
        %v346 = vld [vmem:[%s282 + $0x18] sm:$0xff]
        %v347 = vld [vmem:[%s282 + $0x20] sm:$0xff]
        %v348 = vld [vmem:[%s282 + $0x28] sm:$0xff]
        %v349 = vld [vmem:[%s282 + $0x30] sm:$0xff]
        %v350 = vld [vmem:[%s282 + $0x38] sm:$0xff]
        %v351 = vld [vmem:[%s282 + $0x40] sm:$0xff]
        %v352 = vld [vmem:[%s282 + $0x48] sm:$0xff]
        %v353 = vld [vmem:[%s282 + $0x50] sm:$0xff]
        %v354 = vld [vmem:[%s282 + $0x58] sm:$0xff]
        %v355 = vld [vmem:[%s282 + $0x60] sm:$0xff]
        %v356 = vld [vmem:[%s282 + $0x68] sm:$0xff]
        %v357 = vld [vmem:[%s282 + $0x70] sm:$0xff]
        %v358 = vld [vmem:[%s282 + $0x78] sm:$0xff]
        %v359 = vld [vmem:[%s282 + $0x80] sm:$0xff]
        %v360 = vld [vmem:[%s282 + $0x88] sm:$0xff]
        %v361 = vld [vmem:[%s282 + $0x90] sm:$0xff]
        %v362 = vld [vmem:[%s282 + $0x98] sm:$0xff]
        %v363 = vld [vmem:[%s282 + $0xa0] sm:$0xff]
        %v364 = vld [vmem:[%s282 + $0xa8] sm:$0xff]
        %v365 = vld [vmem:[%s282 + $0xb0] sm:$0xff]
        %v366 = vld [vmem:[%s282 + $0xb8] sm:$0xff]
        %v367 = vld [vmem:[%s282 + $0xc0] sm:$0xff]
        %v368 = vld [vmem:[%s282 + $0xc8] sm:$0xff]
        %v369 = vld [vmem:[%s282 + $0xd0] sm:$0xff]
        %v370 = vld [vmem:[%s282 + $0xd8] sm:$0xff]
        %v371 = vld [vmem:[%s282 + $0xe0] sm:$0xff]
        %v372 = vld [vmem:[%s282 + $0xe8] sm:$0xff]
        %v373 = vld [vmem:[%s282 + $0xf0] sm:$0xff]
        %v374 = vld [vmem:[%s282 + $0xf8] sm:$0xff]
        %v375 = vld [vmem:[#allocation8] sm:$0xff]
        %v376 = vld [vmem:[#allocation8 + $0x8] sm:$0xff]
        %v377 = vld [vmem:[#allocation8 + $0x10] sm:$0xff]
        %v378 = vld [vmem:[#allocation8 + $0x18] sm:$0xff]
        %v379 = vld [vmem:[#allocation8 + $0x20] sm:$0xff]
        %v380 = vld [vmem:[#allocation8 + $0x28] sm:$0xff]
        %v381 = vld [vmem:[#allocation8 + $0x30] sm:$0xff]
        %v382 = vld [vmem:[#allocation8 + $0x38] sm:$0xff]
        %v383 = vld [vmem:[#allocation8 + $0x40] sm:$0xff]
        %v384 = vld [vmem:[#allocation8 + $0x48] sm:$0xff]
        %v385 = vld [vmem:[#allocation8 + $0x50] sm:$0xff]
        %v386 = vld [vmem:[#allocation8 + $0x58] sm:$0xff]
        %v387 = vld [vmem:[#allocation8 + $0x60] sm:$0xff]
        %v388 = vld [vmem:[#allocation8 + $0x68] sm:$0xff]
        %v389 = vld [vmem:[#allocation8 + $0x70] sm:$0xff]
        %v390 = vld [vmem:[#allocation8 + $0x78] sm:$0xff]
        %391 = vmatprep.subr.mxu0 0.0
        %392 = vmatpush1.msra.mxu0 %v375
        %393 = vmatprep.subr.mxu0 0.0
        %394 = vmatpush1.msra.mxu0 %v376
        %395 = vmatprep.subr.mxu0 0.0
        %396 = vmatpush1.msra.mxu0 %v377
        %397 = vmatprep.subr.mxu0 0.0
        %398 = vmatpush1.msra.mxu0 %v378
        %399 = vmatprep.subr.mxu0 0.0
        %400 = vmatpush1.msra.mxu0 %v379
        %401 = vmatprep.subr.mxu0 0.0
        %402 = vmatpush1.msra.mxu0 %v380
        %403 = vmatprep.subr.mxu0 0.0
        %404 = vmatpush1.msra.mxu0 %v381
        %405 = vmatprep.subr.mxu0 0.0
        %406 = vmatpush1.msra.mxu0 %v382
        %407 = vmatprep.subr.mxu0 0.0
        %408 = vmatpush1.msra.mxu0 %v383
        %409 = vmatprep.subr.mxu0 0.0
        %410 = vmatpush1.msra.mxu0 %v384
        %411 = vmatprep.subr.mxu0 0.0
        %412 = vmatpush1.msra.mxu0 %v385
        %413 = vmatprep.subr.mxu0 0.0
        %414 = vmatpush1.msra.mxu0 %v386
        %415 = vmatprep.subr.mxu0 0.0
        %416 = vmatpush1.msra.mxu0 %v387
        %417 = vmatprep.subr.mxu0 0.0
        %418 = vmatpush1.msra.mxu0 %v388
        %419 = vmatprep.subr.mxu0 0.0
        %420 = vmatpush1.msra.mxu0 %v389
        %421 = vmatprep.subr.mxu0 0.0
        %422 = vmatpush1.msra.mxu0 %v390
        %423 = vmatprep.subr.mxu0 0.0
        %424 = vmatpush1.msra.mxu0 0.0
        %425 = vmatprep.subr.mxu0 0.0
        %426 = vmatpush1.msra.mxu0 0.0
        %427 = vmatprep.subr.mxu0 0.0
        %428 = vmatpush1.msra.mxu0 0.0
        %429 = vmatprep.subr.mxu0 0.0
        %430 = vmatpush1.msra.mxu0 0.0
        %431 = vmatprep.subr.mxu0 0.0
        %432 = vmatpush1.msra.mxu0 0.0
        %433 = vmatprep.subr.mxu0 0.0
        %434 = vmatpush1.msra.mxu0 0.0
        %435 = vmatprep.subr.mxu0 0.0
        %436 = vmatpush1.msra.mxu0 0.0
        %437 = vmatprep.subr.mxu0 0.0
        %438 = vmatpush1.msra.mxu0 0.0
        %439 = vmatprep.subr.mxu0 0.0
        %440 = vmatpush1.msra.mxu0 0.0
        %441 = vmatprep.subr.mxu0 0.0
        %442 = vmatpush1.msra.mxu0 0.0
        %443 = vmatprep.subr.mxu0 0.0
        %444 = vmatpush1.msra.mxu0 0.0
        %445 = vmatprep.subr.mxu0 0.0
        %446 = vmatpush1.msra.mxu0 0.0
        %447 = vmatprep.subr.mxu0 0.0
        %448 = vmatpush1.msra.mxu0 0.0
        %449 = vmatprep.subr.mxu0 0.0
        %450 = vmatpush1.msra.mxu0 0.0
        %451 = vmatprep.subr.mxu0 0.0
        %452 = vmatpush1.msra.mxu0 0.0
        %453 = vmatprep.subr.mxu0 0.0
        %454 = vmatpush1.msra.mxu0 0.0
        %455 = vmatprep.mubr.f32.mxu0 0.0
        %456 = vmatmul.mubr.f32.gmra.mrb[0].mxu0 %v343
        %v457 = vpop.f32.mrb[0].mxu0
        %v458 = vadd.f32 0.0, %v457
        %v459 = vpop.f32.mrb[0].mxu0
        %460 = vmatprep.mubr.f32.mxu0 0.0
        %461 = vmatmul.mubr.f32.gmra.mrb[0].mxu0 %v344
        %v462 = vpop.f32.mrb[0].mxu0
        %v463 = vadd.f32 0.0, %v462
        %v464 = vpop.f32.mrb[0].mxu0
        %465 = vmatprep.mubr.f32.mxu0 0.0
        %466 = vmatmul.mubr.f32.gmra.mrb[0].mxu0 %v345
        %v467 = vpop.f32.mrb[0].mxu0
        %v468 = vadd.f32 0.0, %v467
        %v469 = vpop.f32.mrb[0].mxu0
        %470 = vmatprep.mubr.f32.mxu0 0.0
        %471 = vmatmul.mubr.f32.gmra.mrb[0].mxu0 %v346
        %v472 = vpop.f32.mrb[0].mxu0
        %v473 = vadd.f32 0.0, %v472
        %v474 = vpop.f32.mrb[0].mxu0
        %475 = vmatprep.mubr.f32.mxu0 0.0
        %476 = vmatmul.mubr.f32.gmra.mrb[0].mxu0 %v347
        %v477 = vpop.f32.mrb[0].mxu0
        %v478 = vadd.f32 0.0, %v477
        %v479 = vpop.f32.mrb[0].mxu0
        %480 = vmatprep.mubr.f32.mxu0 0.0
        %481 = vmatmul.mubr.f32.gmra.mrb[0].mxu0 %v348
        %v482 = vpop.f32.mrb[0].mxu0
        %v483 = vadd.f32 0.0, %v482
        %v484 = vpop.f32.mrb[0].mxu0
        %485 = vmatprep.mubr.f32.mxu0 0.0
        %486 = vmatmul.mubr.f32.gmra.mrb[0].mxu0 %v349
        %v487 = vpop.f32.mrb[0].mxu0
        %v488 = vadd.f32 0.0, %v487
        %v489 = vpop.f32.mrb[0].mxu0
        %490 = vmatprep.mubr.f32.mxu0 0.0
        %491 = vmatmul.mubr.f32.gmra.mrb[0].mxu0 %v350
        %v492 = vpop.f32.mrb[0].mxu0
        %v493 = vadd.f32 0.0, %v492
        %v494 = vpop.f32.mrb[0].mxu0
        %495 = vmatprep.mubr.f32.mxu0 0.0
        %496 = vmatmul.mubr.f32.gmra.mrb[0].mxu0 %v351
        %v497 = vpop.f32.mrb[0].mxu0
        %v498 = vadd.f32 0.0, %v497
        %v499 = vpop.f32.mrb[0].mxu0
        %500 = vmatprep.mubr.f32.mxu0 0.0
        %501 = vmatmul.mubr.f32.gmra.mrb[0].mxu0 %v352
        %v502 = vpop.f32.mrb[0].mxu0
        %v503 = vadd.f32 0.0, %v502
        %v504 = vpop.f32.mrb[0].mxu0
        %505 = vmatprep.mubr.f32.mxu0 0.0
        %506 = vmatmul.mubr.f32.gmra.mrb[0].mxu0 %v353
        %v507 = vpop.f32.mrb[0].mxu0
        %v508 = vadd.f32 0.0, %v507
        %v509 = vpop.f32.mrb[0].mxu0
        %510 = vmatprep.mubr.f32.mxu0 0.0
        %511 = vmatmul.mubr.f32.gmra.mrb[0].mxu0 %v354
        %v512 = vpop.f32.mrb[0].mxu0
        %v513 = vadd.f32 0.0, %v512
        %v514 = vpop.f32.mrb[0].mxu0
        %515 = vmatprep.mubr.f32.mxu0 0.0
        %516 = vmatmul.mubr.f32.gmra.mrb[0].mxu0 %v355
        %v517 = vpop.f32.mrb[0].mxu0
        %v518 = vadd.f32 0.0, %v517
        %v519 = vpop.f32.mrb[0].mxu0
        %520 = vmatprep.mubr.f32.mxu0 0.0
        %521 = vmatmul.mubr.f32.gmra.mrb[0].mxu0 %v356
        %v522 = vpop.f32.mrb[0].mxu0
        %v523 = vadd.f32 0.0, %v522
        %v524 = vpop.f32.mrb[0].mxu0
        %525 = vmatprep.mubr.f32.mxu0 0.0
        %526 = vmatmul.mubr.f32.gmra.mrb[0].mxu0 %v357
        %v527 = vpop.f32.mrb[0].mxu0
        %v528 = vadd.f32 0.0, %v527
        %v529 = vpop.f32.mrb[0].mxu0
        %530 = vmatprep.mubr.f32.mxu0 0.0
        %531 = vmatmul.mubr.f32.gmra.mrb[0].mxu0 %v358
        %v532 = vpop.f32.mrb[0].mxu0
        %v533 = vadd.f32 0.0, %v532
        %v534 = vpop.f32.mrb[0].mxu0
        %535 = vmatprep.mubr.f32.mxu0 0.0
        %536 = vmatmul.mubr.f32.gmra.mrb[0].mxu0 %v359
        %v537 = vpop.f32.mrb[0].mxu0
        %v538 = vadd.f32 0.0, %v537
        %v539 = vpop.f32.mrb[0].mxu0
        %540 = vmatprep.mubr.f32.mxu0 0.0
        %541 = vmatmul.mubr.f32.gmra.mrb[0].mxu0 %v360
        %v542 = vpop.f32.mrb[0].mxu0
        %v543 = vadd.f32 0.0, %v542
        %v544 = vpop.f32.mrb[0].mxu0
        %545 = vmatprep.mubr.f32.mxu0 0.0
        %546 = vmatmul.mubr.f32.gmra.mrb[0].mxu0 %v361
        %v547 = vpop.f32.mrb[0].mxu0
        %v548 = vadd.f32 0.0, %v547
        %v549 = vpop.f32.mrb[0].mxu0
        %550 = vmatprep.mubr.f32.mxu0 0.0
        %551 = vmatmul.mubr.f32.gmra.mrb[0].mxu0 %v362
        %v552 = vpop.f32.mrb[0].mxu0
        %v553 = vadd.f32 0.0, %v552
        %v554 = vpop.f32.mrb[0].mxu0
        %555 = vmatprep.mubr.f32.mxu0 0.0
        %556 = vmatmul.mubr.f32.gmra.mrb[0].mxu0 %v363
        %v557 = vpop.f32.mrb[0].mxu0
        %v558 = vadd.f32 0.0, %v557
        %v559 = vpop.f32.mrb[0].mxu0
        %560 = vmatprep.mubr.f32.mxu0 0.0
        %561 = vmatmul.mubr.f32.gmra.mrb[0].mxu0 %v364
        %v562 = vpop.f32.mrb[0].mxu0
        %v563 = vadd.f32 0.0, %v562
        %v564 = vpop.f32.mrb[0].mxu0
        %565 = vmatprep.mubr.f32.mxu0 0.0
        %566 = vmatmul.mubr.f32.gmra.mrb[0].mxu0 %v365
        %v567 = vpop.f32.mrb[0].mxu0
        %v568 = vadd.f32 0.0, %v567
        %v569 = vpop.f32.mrb[0].mxu0
        %570 = vmatprep.mubr.f32.mxu0 0.0
        %571 = vmatmul.mubr.f32.gmra.mrb[0].mxu0 %v366
        %v572 = vpop.f32.mrb[0].mxu0
        %v573 = vadd.f32 0.0, %v572
        %v574 = vpop.f32.mrb[0].mxu0
        %575 = vmatprep.mubr.f32.mxu0 0.0
        %576 = vmatmul.mubr.f32.gmra.mrb[0].mxu0 %v367
        %v577 = vpop.f32.mrb[0].mxu0
        %v578 = vadd.f32 0.0, %v577
        %v579 = vpop.f32.mrb[0].mxu0
        %580 = vmatprep.mubr.f32.mxu0 0.0
        %581 = vmatmul.mubr.f32.gmra.mrb[0].mxu0 %v368
        %v582 = vpop.f32.mrb[0].mxu0
        %v583 = vadd.f32 0.0, %v582
        %v584 = vpop.f32.mrb[0].mxu0
        %585 = vmatprep.mubr.f32.mxu0 0.0
        %586 = vmatmul.mubr.f32.gmra.mrb[0].mxu0 %v369
        %v587 = vpop.f32.mrb[0].mxu0
        %v588 = vadd.f32 0.0, %v587
        %v589 = vpop.f32.mrb[0].mxu0
        %590 = vmatprep.mubr.f32.mxu0 0.0
        %591 = vmatmul.mubr.f32.gmra.mrb[0].mxu0 %v370
        %v592 = vpop.f32.mrb[0].mxu0
        %v593 = vadd.f32 0.0, %v592
        %v594 = vpop.f32.mrb[0].mxu0
        %595 = vmatprep.mubr.f32.mxu0 0.0
        %596 = vmatmul.mubr.f32.gmra.mrb[0].mxu0 %v371
        %v597 = vpop.f32.mrb[0].mxu0
        %v598 = vadd.f32 0.0, %v597
        %v599 = vpop.f32.mrb[0].mxu0
        %600 = vmatprep.mubr.f32.mxu0 0.0
        %601 = vmatmul.mubr.f32.gmra.mrb[0].mxu0 %v372
        %v602 = vpop.f32.mrb[0].mxu0
        %v603 = vadd.f32 0.0, %v602
        %v604 = vpop.f32.mrb[0].mxu0
        %605 = vmatprep.mubr.f32.mxu0 0.0
        %606 = vmatmul.mubr.f32.gmra.mrb[0].mxu0 %v373
        %v607 = vpop.f32.mrb[0].mxu0
        %v608 = vadd.f32 0.0, %v607
        %v609 = vpop.f32.mrb[0].mxu0
        %610 = vmatprep.mubr.f32.mxu0 0.0
        %611 = vmatmul.mubr.f32.gmra.mrb[0].mxu0 %v374
        %v612 = vpop.f32.mrb[0].mxu0
        %v613 = vadd.f32 0.0, %v612
        %v614 = vpop.f32.mrb[0].mxu0
        %615 = vdwg.mxu0
        %v616 = vld [vmem:[%s291] sm:$0xff]
        %v617 = vld [vmem:[%s291 + $0x8] sm:$0xff]
        %v618 = vld [vmem:[%s291 + $0x10] sm:$0xff]
        %v619 = vld [vmem:[%s291 + $0x18] sm:$0xff]
        %v624 = vcombine.high %v616, %v616
        %v626 = vunpack.c.l.s4 1966171168
        %v627 = vunpack.c.0.s8 %v626
        %v628 = vlaneseq
        %v629 = vshrl.u32 %v628, 7
        %v630 = vsub.s32 %v627, %v629
        %v631 = vrot.slane %v616, %v630
        %v633 = vunpack.c.l.s4 1966171168
        %v634 = vunpack.c.0.s8 %v633
        %v635 = vlaneseq
        %v636 = vshrl.u32 %v635, 7
        %v637 = vsub.s32 %v634, %v636
        %v638 = vrot.slane %v624, %v637
        %v639 = vcombine.high %v631, %v631
        %v640 = vcombine.high %v638, %v638
        %v642 = vunpack.c.l.s4 1966171168
        %v643 = vunpack.c.0.s8 %v642
        %v644 = vlaneseq
        %v645 = vshrl.u32 %v644, 7
        %v646 = vsub.s32 %v643, %v645
        %v647 = vrot.slane %v631, %v646
        %v649 = vunpack.c.l.s4 1966171168
        %v650 = vunpack.c.0.s8 %v649
        %v651 = vlaneseq
        %v652 = vshrl.u32 %v651, 7
        %v653 = vsub.s32 %v650, %v652
        %v654 = vrot.slane %v638, %v653
        %v656 = vunpack.c.l.s4 1966171168
        %v657 = vunpack.c.0.s8 %v656
        %v658 = vlaneseq
        %v659 = vshrl.u32 %v658, 7
        %v660 = vsub.s32 %v657, %v659
        %v661 = vrot.slane %v639, %v660
        %v663 = vunpack.c.l.s4 1966171168
        %v664 = vunpack.c.0.s8 %v663
        %v665 = vlaneseq
        %v666 = vshrl.u32 %v665, 7
        %v667 = vsub.s32 %v664, %v666
        %v668 = vrot.slane %v640, %v667
        %v669 = vcombine.high %v647, %v647
        %v670 = vcombine.high %v654, %v654
        %v671 = vcombine.high %v661, %v661
        %v672 = vcombine.high %v668, %v668
        %v673 = vcombine.high %v617, %v617
        %v675 = vunpack.c.l.s4 1966171168
        %v676 = vunpack.c.0.s8 %v675
        %v677 = vlaneseq
        %v678 = vshrl.u32 %v677, 7
        %v679 = vsub.s32 %v676, %v678
        %v680 = vrot.slane %v617, %v679
        %v682 = vunpack.c.l.s4 1966171168
        %v683 = vunpack.c.0.s8 %v682
        %v684 = vlaneseq
        %v685 = vshrl.u32 %v684, 7
        %v686 = vsub.s32 %v683, %v685
        %v687 = vrot.slane %v673, %v686
        %v688 = vcombine.high %v680, %v680
        %v689 = vcombine.high %v687, %v687
        %v691 = vunpack.c.l.s4 1966171168
        %v692 = vunpack.c.0.s8 %v691
        %v693 = vlaneseq
        %v694 = vshrl.u32 %v693, 7
        %v695 = vsub.s32 %v692, %v694
        %v696 = vrot.slane %v680, %v695
        %v698 = vunpack.c.l.s4 1966171168
        %v699 = vunpack.c.0.s8 %v698
        %v700 = vlaneseq
        %v701 = vshrl.u32 %v700, 7
        %v702 = vsub.s32 %v699, %v701
        %v703 = vrot.slane %v687, %v702
        %v705 = vunpack.c.l.s4 1966171168
        %v706 = vunpack.c.0.s8 %v705
        %v707 = vlaneseq
        %v708 = vshrl.u32 %v707, 7
        %v709 = vsub.s32 %v706, %v708
        %v710 = vrot.slane %v688, %v709
        %v712 = vunpack.c.l.s4 1966171168
        %v713 = vunpack.c.0.s8 %v712
        %v714 = vlaneseq
        %v715 = vshrl.u32 %v714, 7
        %v716 = vsub.s32 %v713, %v715
        %v717 = vrot.slane %v689, %v716
        %v718 = vcombine.high %v696, %v696
        %v719 = vcombine.high %v703, %v703
        %v720 = vcombine.high %v710, %v710
        %v721 = vcombine.high %v717, %v717
        %v722 = vcombine.high %v618, %v618
        %v724 = vunpack.c.l.s4 1966171168
        %v725 = vunpack.c.0.s8 %v724
        %v726 = vlaneseq
        %v727 = vshrl.u32 %v726, 7
        %v728 = vsub.s32 %v725, %v727
        %v729 = vrot.slane %v618, %v728
        %v731 = vunpack.c.l.s4 1966171168
        %v732 = vunpack.c.0.s8 %v731
        %v733 = vlaneseq
        %v734 = vshrl.u32 %v733, 7
        %v735 = vsub.s32 %v732, %v734
        %v736 = vrot.slane %v722, %v735
        %v737 = vcombine.high %v729, %v729
        %v738 = vcombine.high %v736, %v736
        %v740 = vunpack.c.l.s4 1966171168
        %v741 = vunpack.c.0.s8 %v740
        %v742 = vlaneseq
        %v743 = vshrl.u32 %v742, 7
        %v744 = vsub.s32 %v741, %v743
        %v745 = vrot.slane %v729, %v744
        %v747 = vunpack.c.l.s4 1966171168
        %v748 = vunpack.c.0.s8 %v747
        %v749 = vlaneseq
        %v750 = vshrl.u32 %v749, 7
        %v751 = vsub.s32 %v748, %v750
        %v752 = vrot.slane %v736, %v751
        %v754 = vunpack.c.l.s4 1966171168
        %v755 = vunpack.c.0.s8 %v754
        %v756 = vlaneseq
        %v757 = vshrl.u32 %v756, 7
        %v758 = vsub.s32 %v755, %v757
        %v759 = vrot.slane %v737, %v758
        %v761 = vunpack.c.l.s4 1966171168
        %v762 = vunpack.c.0.s8 %v761
        %v763 = vlaneseq
        %v764 = vshrl.u32 %v763, 7
        %v765 = vsub.s32 %v762, %v764
        %v766 = vrot.slane %v738, %v765
        %v767 = vcombine.high %v745, %v745
        %v768 = vcombine.high %v752, %v752
        %v769 = vcombine.high %v759, %v759
        %v770 = vcombine.high %v766, %v766
        %v771 = vcombine.high %v619, %v619
        %v773 = vunpack.c.l.s4 1966171168
        %v774 = vunpack.c.0.s8 %v773
        %v775 = vlaneseq
        %v776 = vshrl.u32 %v775, 7
        %v777 = vsub.s32 %v774, %v776
        %v778 = vrot.slane %v619, %v777
        %v780 = vunpack.c.l.s4 1966171168
        %v781 = vunpack.c.0.s8 %v780
        %v782 = vlaneseq
        %v783 = vshrl.u32 %v782, 7
        %v784 = vsub.s32 %v781, %v783
        %v785 = vrot.slane %v771, %v784
        %v786 = vcombine.high %v778, %v778
        %v787 = vcombine.high %v785, %v785
        %v789 = vunpack.c.l.s4 1966171168
        %v790 = vunpack.c.0.s8 %v789
        %v791 = vlaneseq
        %v792 = vshrl.u32 %v791, 7
        %v793 = vsub.s32 %v790, %v792
        %v794 = vrot.slane %v778, %v793
        %v796 = vunpack.c.l.s4 1966171168
        %v797 = vunpack.c.0.s8 %v796
        %v798 = vlaneseq
        %v799 = vshrl.u32 %v798, 7
        %v800 = vsub.s32 %v797, %v799
        %v801 = vrot.slane %v785, %v800
        %v803 = vunpack.c.l.s4 1966171168
        %v804 = vunpack.c.0.s8 %v803
        %v805 = vlaneseq
        %v806 = vshrl.u32 %v805, 7
        %v807 = vsub.s32 %v804, %v806
        %v808 = vrot.slane %v786, %v807
        %v810 = vunpack.c.l.s4 1966171168
        %v811 = vunpack.c.0.s8 %v810
        %v812 = vlaneseq
        %v813 = vshrl.u32 %v812, 7
        %v814 = vsub.s32 %v811, %v813
        %v815 = vrot.slane %v787, %v814
        %v816 = vcombine.high %v794, %v794
        %v817 = vcombine.high %v801, %v801
        %v818 = vcombine.high %v808, %v808
        %v819 = vcombine.high %v815, %v815
        %v820 = vlaneseq
        %v821 = vshrl.u32 %v820, 7
        %v822 = vsub.s32 0, %v821
        %v823 = vrot.slane %v647, %v822
        %v824 = vlaneseq
        %v825 = vshrl.u32 %v824, 7
        %v826 = vsub.s32 0, %v825
        %v827 = vrot.slane %v661, %v826
        %v828 = vlaneseq
        %v829 = vshrl.u32 %v828, 7
        %v830 = vsub.s32 0, %v829
        %v831 = vrot.slane %v669, %v830
        %v832 = vlaneseq
        %v833 = vshrl.u32 %v832, 7
        %v834 = vsub.s32 0, %v833
        %v835 = vrot.slane %v671, %v834
        %v836 = vlaneseq
        %v837 = vshrl.u32 %v836, 7
        %v838 = vsub.s32 0, %v837
        %v839 = vrot.slane %v654, %v838
        %v840 = vlaneseq
        %v841 = vshrl.u32 %v840, 7
        %v842 = vsub.s32 0, %v841
        %v843 = vrot.slane %v668, %v842
        %v844 = vlaneseq
        %v845 = vshrl.u32 %v844, 7
        %v846 = vsub.s32 0, %v845
        %v847 = vrot.slane %v670, %v846
        %v848 = vlaneseq
        %v849 = vshrl.u32 %v848, 7
        %v850 = vsub.s32 0, %v849
        %v851 = vrot.slane %v672, %v850
        %v852 = vlaneseq
        %v853 = vshrl.u32 %v852, 7
        %v854 = vsub.s32 0, %v853
        %v855 = vrot.slane %v696, %v854
        %v856 = vlaneseq
        %v857 = vshrl.u32 %v856, 7
        %v858 = vsub.s32 0, %v857
        %v859 = vrot.slane %v710, %v858
        %v860 = vlaneseq
        %v861 = vshrl.u32 %v860, 7
        %v862 = vsub.s32 0, %v861
        %v863 = vrot.slane %v718, %v862
        %v864 = vlaneseq
        %v865 = vshrl.u32 %v864, 7
        %v866 = vsub.s32 0, %v865
        %v867 = vrot.slane %v720, %v866
        %v868 = vlaneseq
        %v869 = vshrl.u32 %v868, 7
        %v870 = vsub.s32 0, %v869
        %v871 = vrot.slane %v703, %v870
        %v872 = vlaneseq
        %v873 = vshrl.u32 %v872, 7
        %v874 = vsub.s32 0, %v873
        %v875 = vrot.slane %v717, %v874
        %v876 = vlaneseq
        %v877 = vshrl.u32 %v876, 7
        %v878 = vsub.s32 0, %v877
        %v879 = vrot.slane %v719, %v878
        %v880 = vlaneseq
        %v881 = vshrl.u32 %v880, 7
        %v882 = vsub.s32 0, %v881
        %v883 = vrot.slane %v721, %v882
        %v884 = vlaneseq
        %v885 = vshrl.u32 %v884, 7
        %v886 = vsub.s32 0, %v885
        %v887 = vrot.slane %v745, %v886
        %v888 = vlaneseq
        %v889 = vshrl.u32 %v888, 7
        %v890 = vsub.s32 0, %v889
        %v891 = vrot.slane %v759, %v890
        %v892 = vlaneseq
        %v893 = vshrl.u32 %v892, 7
        %v894 = vsub.s32 0, %v893
        %v895 = vrot.slane %v767, %v894
        %v896 = vlaneseq
        %v897 = vshrl.u32 %v896, 7
        %v898 = vsub.s32 0, %v897
        %v899 = vrot.slane %v769, %v898
        %v900 = vlaneseq
        %v901 = vshrl.u32 %v900, 7
        %v902 = vsub.s32 0, %v901
        %v903 = vrot.slane %v752, %v902
        %v904 = vlaneseq
        %v905 = vshrl.u32 %v904, 7
        %v906 = vsub.s32 0, %v905
        %v907 = vrot.slane %v766, %v906
        %v908 = vlaneseq
        %v909 = vshrl.u32 %v908, 7
        %v910 = vsub.s32 0, %v909
        %v911 = vrot.slane %v768, %v910
        %v912 = vlaneseq
        %v913 = vshrl.u32 %v912, 7
        %v914 = vsub.s32 0, %v913
        %v915 = vrot.slane %v770, %v914
        %v916 = vlaneseq
        %v917 = vshrl.u32 %v916, 7
        %v918 = vsub.s32 0, %v917
        %v919 = vrot.slane %v794, %v918
        %v920 = vlaneseq
        %v921 = vshrl.u32 %v920, 7
        %v922 = vsub.s32 0, %v921
        %v923 = vrot.slane %v808, %v922
        %v924 = vlaneseq
        %v925 = vshrl.u32 %v924, 7
        %v926 = vsub.s32 0, %v925
        %v927 = vrot.slane %v816, %v926
        %v928 = vlaneseq
        %v929 = vshrl.u32 %v928, 7
        %v930 = vsub.s32 0, %v929
        %v931 = vrot.slane %v818, %v930
        %v932 = vlaneseq
        %v933 = vshrl.u32 %v932, 7
        %v934 = vsub.s32 0, %v933
        %v935 = vrot.slane %v801, %v934
        %v936 = vlaneseq
        %v937 = vshrl.u32 %v936, 7
        %v938 = vsub.s32 0, %v937
        %v939 = vrot.slane %v815, %v938
        %v940 = vlaneseq
        %v941 = vshrl.u32 %v940, 7
        %v942 = vsub.s32 0, %v941
        %v943 = vrot.slane %v817, %v942
        %v944 = vlaneseq
        %v945 = vshrl.u32 %v944, 7
        %v946 = vsub.s32 0, %v945
        %v947 = vrot.slane %v819, %v946
        %v980 = vadd.f32 %v458, %v823
        %v981 = vadd.f32 %v463, %v827
        %v982 = vadd.f32 %v468, %v831
        %v983 = vadd.f32 %v473, %v835
        %v984 = vadd.f32 %v478, %v839
        %v985 = vadd.f32 %v483, %v843
        %v986 = vadd.f32 %v488, %v847
        %v987 = vadd.f32 %v493, %v851
        %v988 = vadd.f32 %v498, %v855
        %v989 = vadd.f32 %v503, %v859
        %v990 = vadd.f32 %v508, %v863
        %v991 = vadd.f32 %v513, %v867
        %v992 = vadd.f32 %v518, %v871
        %v993 = vadd.f32 %v523, %v875
        %v994 = vadd.f32 %v528, %v879
        %v995 = vadd.f32 %v533, %v883
        %v996 = vadd.f32 %v538, %v887
        %v997 = vadd.f32 %v543, %v891
        %v998 = vadd.f32 %v548, %v895
        %v999 = vadd.f32 %v553, %v899
        %v1000 = vadd.f32 %v558, %v903
        %v1001 = vadd.f32 %v563, %v907
        %v1002 = vadd.f32 %v568, %v911
        %v1003 = vadd.f32 %v573, %v915
        %v1004 = vadd.f32 %v578, %v919
        %v1005 = vadd.f32 %v583, %v923
        %v1006 = vadd.f32 %v588, %v927
        %v1007 = vadd.f32 %v593, %v931
        %v1008 = vadd.f32 %v598, %v935
        %v1009 = vadd.f32 %v603, %v939
        %v1010 = vadd.f32 %v608, %v943
        %v1011 = vadd.f32 %v613, %v947
        %v1012 = vtanh.pop %v980
        %v1013 = vtanh.pop %v981
        %v1014 = vtanh.pop %v982
        %v1015 = vtanh.pop %v983
        %v1016 = vtanh.pop %v984
        %v1017 = vtanh.pop %v985
        %v1018 = vtanh.pop %v986
        %v1019 = vtanh.pop %v987
        %v1020 = vtanh.pop %v988
        %v1021 = vtanh.pop %v989
        %v1022 = vtanh.pop %v990
        %v1023 = vtanh.pop %v991
        %v1024 = vtanh.pop %v992
        %v1025 = vtanh.pop %v993
        %v1026 = vtanh.pop %v994
        %v1027 = vtanh.pop %v995
        %v1028 = vtanh.pop %v996
        %v1029 = vtanh.pop %v997
        %v1030 = vtanh.pop %v998
        %v1031 = vtanh.pop %v999
        %v1032 = vtanh.pop %v1000
        %v1033 = vtanh.pop %v1001
        %v1034 = vtanh.pop %v1002
        %v1035 = vtanh.pop %v1003
        %v1036 = vtanh.pop %v1004
        %v1037 = vtanh.pop %v1005
        %v1038 = vtanh.pop %v1006
        %v1039 = vtanh.pop %v1007
        %v1040 = vtanh.pop %v1008
        %v1041 = vtanh.pop %v1009
        %v1042 = vtanh.pop %v1010
        %v1043 = vtanh.pop %v1011
        %v1044 = vld [vmem:[%s3] sm:$0x1]
        %v1046 = vlaneseq
        %v1047 = vshrl.u32 %v1046, 7
        %v1048 = vsub.s32 0, %v1047
        %v1049 = vrot.slane %v1044, %v1048
        %v1051 = vmul.f32 %v1012, %v1049
        %v1052 = vmul.f32 %v1013, %v1049
        %v1053 = vmul.f32 %v1014, %v1049
        %v1054 = vmul.f32 %v1015, %v1049
        %v1055 = vmul.f32 %v1016, %v1049
        %v1056 = vmul.f32 %v1017, %v1049
        %v1057 = vmul.f32 %v1018, %v1049
        %v1058 = vmul.f32 %v1019, %v1049
        %v1059 = vmul.f32 %v1020, %v1049
        %v1060 = vmul.f32 %v1021, %v1049
        %v1061 = vmul.f32 %v1022, %v1049
        %v1062 = vmul.f32 %v1023, %v1049
        %v1063 = vmul.f32 %v1024, %v1049
        %v1064 = vmul.f32 %v1025, %v1049
        %v1065 = vmul.f32 %v1026, %v1049
        %v1066 = vmul.f32 %v1027, %v1049
        %v1067 = vmul.f32 %v1028, %v1049
        %v1068 = vmul.f32 %v1029, %v1049
        %v1069 = vmul.f32 %v1030, %v1049
        %v1070 = vmul.f32 %v1031, %v1049
        %v1071 = vmul.f32 %v1032, %v1049
        %v1072 = vmul.f32 %v1033, %v1049
        %v1073 = vmul.f32 %v1034, %v1049
        %v1074 = vmul.f32 %v1035, %v1049
        %v1075 = vmul.f32 %v1036, %v1049
        %v1076 = vmul.f32 %v1037, %v1049
        %v1077 = vmul.f32 %v1038, %v1049
        %v1078 = vmul.f32 %v1039, %v1049
        %v1079 = vmul.f32 %v1040, %v1049
        %v1080 = vmul.f32 %v1041, %v1049
        %v1081 = vmul.f32 %v1042, %v1049
        %v1082 = vmul.f32 %v1043, %v1049
        %1083 = vadd.xlane.f32.xlu0 %v1051
        %v1084 = vpop.xlane.xlu0 %1083
        %1085 = vadd.xlane.f32.xlu0 %v1052
        %v1086 = vpop.xlane.xlu0 %1085
        %1087 = vadd.xlane.f32.xlu0 %v1053
        %v1088 = vpop.xlane.xlu0 %1087
        %1089 = vadd.xlane.f32.xlu0 %v1054
        %v1090 = vpop.xlane.xlu0 %1089
        %1091 = vadd.xlane.f32.xlu0 %v1055
        %v1092 = vpop.xlane.xlu0 %1091
        %1093 = vadd.xlane.f32.xlu0 %v1056
        %v1094 = vpop.xlane.xlu0 %1093
        %1095 = vadd.xlane.f32.xlu0 %v1057
        %v1096 = vpop.xlane.xlu0 %1095
        %1097 = vadd.xlane.f32.xlu0 %v1058
        %v1098 = vpop.xlane.xlu0 %1097
        %1099 = vadd.xlane.f32.xlu0 %v1059
        %v1100 = vpop.xlane.xlu0 %1099
        %1101 = vadd.xlane.f32.xlu0 %v1060
        %v1102 = vpop.xlane.xlu0 %1101
        %1103 = vadd.xlane.f32.xlu0 %v1061
        %v1104 = vpop.xlane.xlu0 %1103
        %1105 = vadd.xlane.f32.xlu0 %v1062
        %v1106 = vpop.xlane.xlu0 %1105
        %1107 = vadd.xlane.f32.xlu0 %v1063
        %v1108 = vpop.xlane.xlu0 %1107
        %1109 = vadd.xlane.f32.xlu0 %v1064
        %v1110 = vpop.xlane.xlu0 %1109
        %1111 = vadd.xlane.f32.xlu0 %v1065
        %v1112 = vpop.xlane.xlu0 %1111
        %1113 = vadd.xlane.f32.xlu0 %v1066
        %v1114 = vpop.xlane.xlu0 %1113
        %1115 = vadd.xlane.f32.xlu0 %v1067
        %v1116 = vpop.xlane.xlu0 %1115
        %1117 = vadd.xlane.f32.xlu0 %v1068
        %v1118 = vpop.xlane.xlu0 %1117
        %1119 = vadd.xlane.f32.xlu0 %v1069
        %v1120 = vpop.xlane.xlu0 %1119
        %1121 = vadd.xlane.f32.xlu0 %v1070
        %v1122 = vpop.xlane.xlu0 %1121
        %1123 = vadd.xlane.f32.xlu0 %v1071
        %v1124 = vpop.xlane.xlu0 %1123
        %1125 = vadd.xlane.f32.xlu0 %v1072
        %v1126 = vpop.xlane.xlu0 %1125
        %1127 = vadd.xlane.f32.xlu0 %v1073
        %v1128 = vpop.xlane.xlu0 %1127
        %1129 = vadd.xlane.f32.xlu0 %v1074
        %v1130 = vpop.xlane.xlu0 %1129
        %1131 = vadd.xlane.f32.xlu0 %v1075
        %v1132 = vpop.xlane.xlu0 %1131
        %1133 = vadd.xlane.f32.xlu0 %v1076
        %v1134 = vpop.xlane.xlu0 %1133
        %1135 = vadd.xlane.f32.xlu0 %v1077
        %v1136 = vpop.xlane.xlu0 %1135
        %1137 = vadd.xlane.f32.xlu0 %v1078
        %v1138 = vpop.xlane.xlu0 %1137
        %1139 = vadd.xlane.f32.xlu0 %v1079
        %v1140 = vpop.xlane.xlu0 %1139
        %1141 = vadd.xlane.f32.xlu0 %v1080
        %v1142 = vpop.xlane.xlu0 %1141
        %1143 = vadd.xlane.f32.xlu0 %v1081
        %v1144 = vpop.xlane.xlu0 %1143
        %1145 = vadd.xlane.f32.xlu0 %v1082
        %v1146 = vpop.xlane.xlu0 %1145
        %v1147 = vld [vmem:[#allocation2] sm:$0x1]
        %v1149 = vlaneseq
        %v1150 = vshrl.u32 %v1149, 7
        %v1151 = vsub.s32 0, %v1150
        %v1152 = vrot.slane %v1147, %v1151
        %1153 = vset.pattern.permute.xlu0 0
        %1154 = vperm.xlu0 %1153, %v1152
        %v1155 = vpop.permute.xlu0 %1154
        %v1157 = vadd.f32 %v1084, %v1155
        %v1158 = vadd.f32 %v1086, %v1155
        %v1159 = vadd.f32 %v1088, %v1155
        %v1160 = vadd.f32 %v1090, %v1155
        %v1161 = vadd.f32 %v1092, %v1155
        %v1162 = vadd.f32 %v1094, %v1155
        %v1163 = vadd.f32 %v1096, %v1155
        %v1164 = vadd.f32 %v1098, %v1155
        %v1165 = vadd.f32 %v1100, %v1155
        %v1166 = vadd.f32 %v1102, %v1155
        %v1167 = vadd.f32 %v1104, %v1155
        %v1168 = vadd.f32 %v1106, %v1155
        %v1169 = vadd.f32 %v1108, %v1155
        %v1170 = vadd.f32 %v1110, %v1155
        %v1171 = vadd.f32 %v1112, %v1155
        %v1172 = vadd.f32 %v1114, %v1155
        %v1173 = vadd.f32 %v1116, %v1155
        %v1174 = vadd.f32 %v1118, %v1155
        %v1175 = vadd.f32 %v1120, %v1155
        %v1176 = vadd.f32 %v1122, %v1155
        %v1177 = vadd.f32 %v1124, %v1155
        %v1178 = vadd.f32 %v1126, %v1155
        %v1179 = vadd.f32 %v1128, %v1155
        %v1180 = vadd.f32 %v1130, %v1155
        %v1181 = vadd.f32 %v1132, %v1155
        %v1182 = vadd.f32 %v1134, %v1155
        %v1183 = vadd.f32 %v1136, %v1155
        %v1184 = vadd.f32 %v1138, %v1155
        %v1185 = vadd.f32 %v1140, %v1155
        %v1186 = vadd.f32 %v1142, %v1155
        %v1187 = vadd.f32 %v1144, %v1155
        %v1188 = vadd.f32 %v1146, %v1155
        %v1221 = vlaneseq
        %v1222 = vand.u32 %v1221, 127
        %v1223 = vlaneseq
        %v1224 = vshrl.u32 %v1223, 7
        %v1225 = vsub.s32 %v1222, %v1224
        %v1226 = vrot.slane %v1157, %v1225
        %v1227 = vlaneseq
        %v1228 = vshrl.u32 %v1227, 7
        %v1229 = vsub.s32 %v1222, %v1228
        %v1230 = vrot.slane %v1158, %v1229
        %v1231 = vlaneseq
        %v1232 = vshrl.u32 %v1231, 7
        %v1233 = vsub.s32 %v1222, %v1232
        %v1234 = vrot.slane %v1159, %v1233
        %v1235 = vlaneseq
        %v1236 = vshrl.u32 %v1235, 7
        %v1237 = vsub.s32 %v1222, %v1236
        %v1238 = vrot.slane %v1160, %v1237
        %v1239 = vlaneseq
        %v1240 = vshrl.u32 %v1239, 7
        %v1241 = vsub.s32 %v1222, %v1240
        %v1242 = vrot.slane %v1161, %v1241
        %v1243 = vlaneseq
        %v1244 = vshrl.u32 %v1243, 7
        %v1245 = vsub.s32 %v1222, %v1244
        %v1246 = vrot.slane %v1162, %v1245
        %v1247 = vlaneseq
        %v1248 = vshrl.u32 %v1247, 7
        %v1249 = vsub.s32 %v1222, %v1248
        %v1250 = vrot.slane %v1163, %v1249
        %v1251 = vlaneseq
        %v1252 = vshrl.u32 %v1251, 7
        %v1253 = vsub.s32 %v1222, %v1252
        %v1254 = vrot.slane %v1164, %v1253
        %v1255 = vlaneseq
        %v1256 = vshrl.u32 %v1255, 7
        %v1257 = vsub.s32 %v1222, %v1256
        %v1258 = vrot.slane %v1165, %v1257
        %v1259 = vlaneseq
        %v1260 = vshrl.u32 %v1259, 7
        %v1261 = vsub.s32 %v1222, %v1260
        %v1262 = vrot.slane %v1166, %v1261
        %v1263 = vlaneseq
        %v1264 = vshrl.u32 %v1263, 7
        %v1265 = vsub.s32 %v1222, %v1264
        %v1266 = vrot.slane %v1167, %v1265
        %v1267 = vlaneseq
        %v1268 = vshrl.u32 %v1267, 7
        %v1269 = vsub.s32 %v1222, %v1268
        %v1270 = vrot.slane %v1168, %v1269
        %v1271 = vlaneseq
        %v1272 = vshrl.u32 %v1271, 7
        %v1273 = vsub.s32 %v1222, %v1272
        %v1274 = vrot.slane %v1169, %v1273
        %v1275 = vlaneseq
        %v1276 = vshrl.u32 %v1275, 7
        %v1277 = vsub.s32 %v1222, %v1276
        %v1278 = vrot.slane %v1170, %v1277
        %v1279 = vlaneseq
        %v1280 = vshrl.u32 %v1279, 7
        %v1281 = vsub.s32 %v1222, %v1280
        %v1282 = vrot.slane %v1171, %v1281
        %v1283 = vlaneseq
        %v1284 = vshrl.u32 %v1283, 7
        %v1285 = vsub.s32 %v1222, %v1284
        %v1286 = vrot.slane %v1172, %v1285
        %v1287 = vlaneseq
        %v1288 = vshrl.u32 %v1287, 7
        %v1289 = vsub.s32 %v1222, %v1288
        %v1290 = vrot.slane %v1173, %v1289
        %v1291 = vlaneseq
        %v1292 = vshrl.u32 %v1291, 7
        %v1293 = vsub.s32 %v1222, %v1292
        %v1294 = vrot.slane %v1174, %v1293
        %v1295 = vlaneseq
        %v1296 = vshrl.u32 %v1295, 7
        %v1297 = vsub.s32 %v1222, %v1296
        %v1298 = vrot.slane %v1175, %v1297
        %v1299 = vlaneseq
        %v1300 = vshrl.u32 %v1299, 7
        %v1301 = vsub.s32 %v1222, %v1300
        %v1302 = vrot.slane %v1176, %v1301
        %v1303 = vlaneseq
        %v1304 = vshrl.u32 %v1303, 7
        %v1305 = vsub.s32 %v1222, %v1304
        %v1306 = vrot.slane %v1177, %v1305
        %v1307 = vlaneseq
        %v1308 = vshrl.u32 %v1307, 7
        %v1309 = vsub.s32 %v1222, %v1308
        %v1310 = vrot.slane %v1178, %v1309
        %v1311 = vlaneseq
        %v1312 = vshrl.u32 %v1311, 7
        %v1313 = vsub.s32 %v1222, %v1312
        %v1314 = vrot.slane %v1179, %v1313
        %v1315 = vlaneseq
        %v1316 = vshrl.u32 %v1315, 7
        %v1317 = vsub.s32 %v1222, %v1316
        %v1318 = vrot.slane %v1180, %v1317
        %v1319 = vlaneseq
        %v1320 = vshrl.u32 %v1319, 7
        %v1321 = vsub.s32 %v1222, %v1320
        %v1322 = vrot.slane %v1181, %v1321
        %v1323 = vlaneseq
        %v1324 = vshrl.u32 %v1323, 7
        %v1325 = vsub.s32 %v1222, %v1324
        %v1326 = vrot.slane %v1182, %v1325
        %v1327 = vlaneseq
        %v1328 = vshrl.u32 %v1327, 7
        %v1329 = vsub.s32 %v1222, %v1328
        %v1330 = vrot.slane %v1183, %v1329
        %v1331 = vlaneseq
        %v1332 = vshrl.u32 %v1331, 7
        %v1333 = vsub.s32 %v1222, %v1332
        %v1334 = vrot.slane %v1184, %v1333
        %v1335 = vlaneseq
        %v1336 = vshrl.u32 %v1335, 7
        %v1337 = vsub.s32 %v1222, %v1336
        %v1338 = vrot.slane %v1185, %v1337
        %v1339 = vlaneseq
        %v1340 = vshrl.u32 %v1339, 7
        %v1341 = vsub.s32 %v1222, %v1340
        %v1342 = vrot.slane %v1186, %v1341
        %v1343 = vlaneseq
        %v1344 = vshrl.u32 %v1343, 7
        %v1345 = vsub.s32 %v1222, %v1344
        %v1346 = vrot.slane %v1187, %v1345
        %v1347 = vlaneseq
        %v1348 = vshrl.u32 %v1347, 7
        %v1349 = vsub.s32 %v1222, %v1348
        %v1350 = vrot.slane %v1188, %v1349
        %vm1351 = vcmask 1041409
        %v1352 = vsel %vm1351, %v1230, %v1226
        %vm1353 = vcmask 1042434
        %v1354 = vsel %vm1353, %v1234, %v1352
        %vm1355 = vcmask 1043459
        %v1356 = vsel %vm1355, %v1238, %v1354
        %vm1357 = vcmask 1044484
        %v1358 = vsel %vm1357, %v1242, %v1356
        %vm1359 = vcmask 1045509
        %v1360 = vsel %vm1359, %v1246, %v1358
        %vm1361 = vcmask 1046534
        %v1362 = vsel %vm1361, %v1250, %v1360
        %vm1363 = vcmask 1047559
        %v1364 = vsel %vm1363, %v1254, %v1362
        %v1365 = vsel %vm1351, %v1262, %v1258
        %v1366 = vsel %vm1353, %v1266, %v1365
        %v1367 = vsel %vm1355, %v1270, %v1366
        %v1368 = vsel %vm1357, %v1274, %v1367
        %v1369 = vsel %vm1359, %v1278, %v1368
        %v1370 = vsel %vm1361, %v1282, %v1369
        %v1371 = vsel %vm1363, %v1286, %v1370
        %v1372 = vsel %vm1351, %v1294, %v1290
        %v1373 = vsel %vm1353, %v1298, %v1372
        %v1374 = vsel %vm1355, %v1302, %v1373
        %v1375 = vsel %vm1357, %v1306, %v1374
        %v1376 = vsel %vm1359, %v1310, %v1375
        %v1377 = vsel %vm1361, %v1314, %v1376
        %v1378 = vsel %vm1363, %v1318, %v1377
        %v1379 = vsel %vm1351, %v1326, %v1322
        %v1380 = vsel %vm1353, %v1330, %v1379
        %v1381 = vsel %vm1355, %v1334, %v1380
        %v1382 = vsel %vm1357, %v1338, %v1381
        %v1383 = vsel %vm1359, %v1342, %v1382
        %v1384 = vsel %vm1361, %v1346, %v1383
        %v1385 = vsel %vm1363, %v1350, %v1384
        %vm1390 = vcmask 64512
        %v1391 = vsel %vm1390, %v1364, -inf
        %1392 = vmax.xlane.f32.xlu0 %v1391
        %v1393 = vpop.xlane.xlu0 %1392
        %v1394 = vsel %vm1390, %v1371, -inf
        %1395 = vmax.xlane.f32.xlu0 %v1394
        %v1396 = vpop.xlane.xlu0 %1395
        %v1397 = vsel %vm1390, %v1378, -inf
        %1398 = vmax.xlane.f32.xlu0 %v1397
        %v1399 = vpop.xlane.xlu0 %1398
        %v1400 = vsel %vm1390, %v1385, -inf
        %1401 = vmax.xlane.f32.xlu0 %v1400
        %v1402 = vpop.xlane.xlu0 %1401
        %v1407 = vlaneseq
        %v1408 = vshrl.u32 %v1407, 7
        %v1409 = vsub.s32 0, %v1408
        %v1410 = vrot.slane %v1393, %v1409
        %v1411 = vlaneseq
        %v1412 = vshrl.u32 %v1411, 7
        %v1413 = vsub.s32 1, %v1412
        %v1414 = vrot.slane %v1393, %v1413
        %v1415 = vlaneseq
        %v1416 = vshrl.u32 %v1415, 7
        %v1417 = vsub.s32 2, %v1416
        %v1418 = vrot.slane %v1393, %v1417
        %v1419 = vlaneseq
        %v1420 = vshrl.u32 %v1419, 7
        %v1421 = vsub.s32 3, %v1420
        %v1422 = vrot.slane %v1393, %v1421
        %v1423 = vlaneseq
        %v1424 = vshrl.u32 %v1423, 7
        %v1425 = vsub.s32 4, %v1424
        %v1426 = vrot.slane %v1393, %v1425
        %v1427 = vlaneseq
        %v1428 = vshrl.u32 %v1427, 7
        %v1429 = vsub.s32 5, %v1428
        %v1430 = vrot.slane %v1393, %v1429
        %v1431 = vlaneseq
        %v1432 = vshrl.u32 %v1431, 7
        %v1433 = vsub.s32 6, %v1432
        %v1434 = vrot.slane %v1393, %v1433
        %v1435 = vlaneseq
        %v1436 = vshrl.u32 %v1435, 7
        %v1437 = vsub.s32 7, %v1436
        %v1438 = vrot.slane %v1393, %v1437
        %v1439 = vlaneseq
        %v1440 = vshrl.u32 %v1439, 7
        %v1441 = vsub.s32 0, %v1440
        %v1442 = vrot.slane %v1396, %v1441
        %v1443 = vlaneseq
        %v1444 = vshrl.u32 %v1443, 7
        %v1445 = vsub.s32 1, %v1444
        %v1446 = vrot.slane %v1396, %v1445
        %v1447 = vlaneseq
        %v1448 = vshrl.u32 %v1447, 7
        %v1449 = vsub.s32 2, %v1448
        %v1450 = vrot.slane %v1396, %v1449
        %v1451 = vlaneseq
        %v1452 = vshrl.u32 %v1451, 7
        %v1453 = vsub.s32 3, %v1452
        %v1454 = vrot.slane %v1396, %v1453
        %v1455 = vlaneseq
        %v1456 = vshrl.u32 %v1455, 7
        %v1457 = vsub.s32 4, %v1456
        %v1458 = vrot.slane %v1396, %v1457
        %v1459 = vlaneseq
        %v1460 = vshrl.u32 %v1459, 7
        %v1461 = vsub.s32 5, %v1460
        %v1462 = vrot.slane %v1396, %v1461
        %v1463 = vlaneseq
        %v1464 = vshrl.u32 %v1463, 7
        %v1465 = vsub.s32 6, %v1464
        %v1466 = vrot.slane %v1396, %v1465
        %v1467 = vlaneseq
        %v1468 = vshrl.u32 %v1467, 7
        %v1469 = vsub.s32 7, %v1468
        %v1470 = vrot.slane %v1396, %v1469
        %v1471 = vlaneseq
        %v1472 = vshrl.u32 %v1471, 7
        %v1473 = vsub.s32 0, %v1472
        %v1474 = vrot.slane %v1399, %v1473
        %v1475 = vlaneseq
        %v1476 = vshrl.u32 %v1475, 7
        %v1477 = vsub.s32 1, %v1476
        %v1478 = vrot.slane %v1399, %v1477
        %v1479 = vlaneseq
        %v1480 = vshrl.u32 %v1479, 7
        %v1481 = vsub.s32 2, %v1480
        %v1482 = vrot.slane %v1399, %v1481
        %v1483 = vlaneseq
        %v1484 = vshrl.u32 %v1483, 7
        %v1485 = vsub.s32 3, %v1484
        %v1486 = vrot.slane %v1399, %v1485
        %v1487 = vlaneseq
        %v1488 = vshrl.u32 %v1487, 7
        %v1489 = vsub.s32 4, %v1488
        %v1490 = vrot.slane %v1399, %v1489
        %v1491 = vlaneseq
        %v1492 = vshrl.u32 %v1491, 7
        %v1493 = vsub.s32 5, %v1492
        %v1494 = vrot.slane %v1399, %v1493
        %v1495 = vlaneseq
        %v1496 = vshrl.u32 %v1495, 7
        %v1497 = vsub.s32 6, %v1496
        %v1498 = vrot.slane %v1399, %v1497
        %v1499 = vlaneseq
        %v1500 = vshrl.u32 %v1499, 7
        %v1501 = vsub.s32 7, %v1500
        %v1502 = vrot.slane %v1399, %v1501
        %v1503 = vlaneseq
        %v1504 = vshrl.u32 %v1503, 7
        %v1505 = vsub.s32 0, %v1504
        %v1506 = vrot.slane %v1402, %v1505
        %v1507 = vlaneseq
        %v1508 = vshrl.u32 %v1507, 7
        %v1509 = vsub.s32 1, %v1508
        %v1510 = vrot.slane %v1402, %v1509
        %v1511 = vlaneseq
        %v1512 = vshrl.u32 %v1511, 7
        %v1513 = vsub.s32 2, %v1512
        %v1514 = vrot.slane %v1402, %v1513
        %v1515 = vlaneseq
        %v1516 = vshrl.u32 %v1515, 7
        %v1517 = vsub.s32 3, %v1516
        %v1518 = vrot.slane %v1402, %v1517
        %v1519 = vlaneseq
        %v1520 = vshrl.u32 %v1519, 7
        %v1521 = vsub.s32 4, %v1520
        %v1522 = vrot.slane %v1402, %v1521
        %v1523 = vlaneseq
        %v1524 = vshrl.u32 %v1523, 7
        %v1525 = vsub.s32 5, %v1524
        %v1526 = vrot.slane %v1402, %v1525
        %v1527 = vlaneseq
        %v1528 = vshrl.u32 %v1527, 7
        %v1529 = vsub.s32 6, %v1528
        %v1530 = vrot.slane %v1402, %v1529
        %v1531 = vlaneseq
        %v1532 = vshrl.u32 %v1531, 7
        %v1533 = vsub.s32 7, %v1532
        %v1534 = vrot.slane %v1402, %v1533
        %v1567 = vsub.f32 %v1157, %v1410
        %v1568 = vsub.f32 %v1158, %v1414
        %v1569 = vsub.f32 %v1159, %v1418
        %v1570 = vsub.f32 %v1160, %v1422
        %v1571 = vsub.f32 %v1161, %v1426
        %v1572 = vsub.f32 %v1162, %v1430
        %v1573 = vsub.f32 %v1163, %v1434
        %v1574 = vsub.f32 %v1164, %v1438
        %v1575 = vsub.f32 %v1165, %v1442
        %v1576 = vsub.f32 %v1166, %v1446
        %v1577 = vsub.f32 %v1167, %v1450
        %v1578 = vsub.f32 %v1168, %v1454
        %v1579 = vsub.f32 %v1169, %v1458
        %v1580 = vsub.f32 %v1170, %v1462
        %v1581 = vsub.f32 %v1171, %v1466
        %v1582 = vsub.f32 %v1172, %v1470
        %v1583 = vsub.f32 %v1173, %v1474
        %v1584 = vsub.f32 %v1174, %v1478
        %v1585 = vsub.f32 %v1175, %v1482
        %v1586 = vsub.f32 %v1176, %v1486
        %v1587 = vsub.f32 %v1177, %v1490
        %v1588 = vsub.f32 %v1178, %v1494
        %v1589 = vsub.f32 %v1179, %v1498
        %v1590 = vsub.f32 %v1180, %v1502
        %v1591 = vsub.f32 %v1181, %v1506
        %v1592 = vsub.f32 %v1182, %v1510
        %v1593 = vsub.f32 %v1183, %v1514
        %v1594 = vsub.f32 %v1184, %v1518
        %v1595 = vsub.f32 %v1185, %v1522
        %v1596 = vsub.f32 %v1186, %v1526
        %v1597 = vsub.f32 %v1187, %v1530
        %v1598 = vsub.f32 %v1188, %v1534
        %v1599 = vmul.f32 %v1567, 1.442695
        %v1600 = vpow.pop %v1599
        %v1601 = vmul.f32 %v1568, 1.442695
        %v1602 = vpow.pop %v1601
        %v1603 = vmul.f32 %v1569, 1.442695
        %v1604 = vpow.pop %v1603
        %v1605 = vmul.f32 %v1570, 1.442695
        %v1606 = vpow.pop %v1605
        %v1607 = vmul.f32 %v1571, 1.442695
        %v1608 = vpow.pop %v1607
        %v1609 = vmul.f32 %v1572, 1.442695
        %v1610 = vpow.pop %v1609
        %v1611 = vmul.f32 %v1573, 1.442695
        %v1612 = vpow.pop %v1611
        %v1613 = vmul.f32 %v1574, 1.442695
        %v1614 = vpow.pop %v1613
        %v1615 = vmul.f32 %v1575, 1.442695
        %v1616 = vpow.pop %v1615
        %v1617 = vmul.f32 %v1576, 1.442695
        %v1618 = vpow.pop %v1617
        %v1619 = vmul.f32 %v1577, 1.442695
        %v1620 = vpow.pop %v1619
        %v1621 = vmul.f32 %v1578, 1.442695
        %v1622 = vpow.pop %v1621
        %v1623 = vmul.f32 %v1579, 1.442695
        %v1624 = vpow.pop %v1623
        %v1625 = vmul.f32 %v1580, 1.442695
        %v1626 = vpow.pop %v1625
        %v1627 = vmul.f32 %v1581, 1.442695
        %v1628 = vpow.pop %v1627
        %v1629 = vmul.f32 %v1582, 1.442695
        %v1630 = vpow.pop %v1629
        %v1631 = vmul.f32 %v1583, 1.442695
        %v1632 = vpow.pop %v1631
        %v1633 = vmul.f32 %v1584, 1.442695
        %v1634 = vpow.pop %v1633
        %v1635 = vmul.f32 %v1585, 1.442695
        %v1636 = vpow.pop %v1635
        %v1637 = vmul.f32 %v1586, 1.442695
        %v1638 = vpow.pop %v1637
        %v1639 = vmul.f32 %v1587, 1.442695
        %v1640 = vpow.pop %v1639
        %v1641 = vmul.f32 %v1588, 1.442695
        %v1642 = vpow.pop %v1641
        %v1643 = vmul.f32 %v1589, 1.442695
        %v1644 = vpow.pop %v1643
        %v1645 = vmul.f32 %v1590, 1.442695
        %v1646 = vpow.pop %v1645
        %v1647 = vmul.f32 %v1591, 1.442695
        %v1648 = vpow.pop %v1647
        %v1649 = vmul.f32 %v1592, 1.442695
        %v1650 = vpow.pop %v1649
        %v1651 = vmul.f32 %v1593, 1.442695
        %v1652 = vpow.pop %v1651
        %v1653 = vmul.f32 %v1594, 1.442695
        %v1654 = vpow.pop %v1653
        %v1655 = vmul.f32 %v1595, 1.442695
        %v1656 = vpow.pop %v1655
        %v1657 = vmul.f32 %v1596, 1.442695
        %v1658 = vpow.pop %v1657
        %v1659 = vmul.f32 %v1597, 1.442695
        %v1660 = vpow.pop %v1659
        %v1661 = vmul.f32 %v1598, 1.442695
        %v1662 = vpow.pop %v1661
        %1695 = vset.pattern.permute.xlu0 0
        %1696 = vperm.xlu0 %1695, %v1600
        %v1697 = vpop.permute.xlu0 %1696
        %1698 = vset.pattern.permute.xlu0 0
        %1699 = vperm.xlu0 %1698, %v1602
        %v1700 = vpop.permute.xlu0 %1699
        %1701 = vset.pattern.permute.xlu0 0
        %1702 = vperm.xlu0 %1701, %v1604
        %v1703 = vpop.permute.xlu0 %1702
        %1704 = vset.pattern.permute.xlu0 0
        %1705 = vperm.xlu0 %1704, %v1606
        %v1706 = vpop.permute.xlu0 %1705
        %1707 = vset.pattern.permute.xlu0 0
        %1708 = vperm.xlu0 %1707, %v1608
        %v1709 = vpop.permute.xlu0 %1708
        %1710 = vset.pattern.permute.xlu0 0
        %1711 = vperm.xlu0 %1710, %v1610
        %v1712 = vpop.permute.xlu0 %1711
        %1713 = vset.pattern.permute.xlu0 0
        %1714 = vperm.xlu0 %1713, %v1612
        %v1715 = vpop.permute.xlu0 %1714
        %1716 = vset.pattern.permute.xlu0 0
        %1717 = vperm.xlu0 %1716, %v1614
        %v1718 = vpop.permute.xlu0 %1717
        %1719 = vset.pattern.permute.xlu0 0
        %1720 = vperm.xlu0 %1719, %v1616
        %v1721 = vpop.permute.xlu0 %1720
        %1722 = vset.pattern.permute.xlu0 0
        %1723 = vperm.xlu0 %1722, %v1618
        %v1724 = vpop.permute.xlu0 %1723
        %1725 = vset.pattern.permute.xlu0 0
        %1726 = vperm.xlu0 %1725, %v1620
        %v1727 = vpop.permute.xlu0 %1726
        %1728 = vset.pattern.permute.xlu0 0
        %1729 = vperm.xlu0 %1728, %v1622
        %v1730 = vpop.permute.xlu0 %1729
        %1731 = vset.pattern.permute.xlu0 0
        %1732 = vperm.xlu0 %1731, %v1624
        %v1733 = vpop.permute.xlu0 %1732
        %1734 = vset.pattern.permute.xlu0 0
        %1735 = vperm.xlu0 %1734, %v1626
        %v1736 = vpop.permute.xlu0 %1735
        %1737 = vset.pattern.permute.xlu0 0
        %1738 = vperm.xlu0 %1737, %v1628
        %v1739 = vpop.permute.xlu0 %1738
        %1740 = vset.pattern.permute.xlu0 0
        %1741 = vperm.xlu0 %1740, %v1630
        %v1742 = vpop.permute.xlu0 %1741
        %1743 = vset.pattern.permute.xlu0 0
        %1744 = vperm.xlu0 %1743, %v1632
        %v1745 = vpop.permute.xlu0 %1744
        %1746 = vset.pattern.permute.xlu0 0
        %1747 = vperm.xlu0 %1746, %v1634
        %v1748 = vpop.permute.xlu0 %1747
        %1749 = vset.pattern.permute.xlu0 0
        %1750 = vperm.xlu0 %1749, %v1636
        %v1751 = vpop.permute.xlu0 %1750
        %1752 = vset.pattern.permute.xlu0 0
        %1753 = vperm.xlu0 %1752, %v1638
        %v1754 = vpop.permute.xlu0 %1753
        %1755 = vset.pattern.permute.xlu0 0
        %1756 = vperm.xlu0 %1755, %v1640
        %v1757 = vpop.permute.xlu0 %1756
        %1758 = vset.pattern.permute.xlu0 0
        %1759 = vperm.xlu0 %1758, %v1642
        %v1760 = vpop.permute.xlu0 %1759
        %1761 = vset.pattern.permute.xlu0 0
        %1762 = vperm.xlu0 %1761, %v1644
        %v1763 = vpop.permute.xlu0 %1762
        %1764 = vset.pattern.permute.xlu0 0
        %1765 = vperm.xlu0 %1764, %v1646
        %v1766 = vpop.permute.xlu0 %1765
        %1767 = vset.pattern.permute.xlu0 0
        %1768 = vperm.xlu0 %1767, %v1648
        %v1769 = vpop.permute.xlu0 %1768
        %1770 = vset.pattern.permute.xlu0 0
        %1771 = vperm.xlu0 %1770, %v1650
        %v1772 = vpop.permute.xlu0 %1771
        %1773 = vset.pattern.permute.xlu0 0
        %1774 = vperm.xlu0 %1773, %v1652
        %v1775 = vpop.permute.xlu0 %1774
        %1776 = vset.pattern.permute.xlu0 0
        %1777 = vperm.xlu0 %1776, %v1654
        %v1778 = vpop.permute.xlu0 %1777
        %1779 = vset.pattern.permute.xlu0 0
        %1780 = vperm.xlu0 %1779, %v1656
        %v1781 = vpop.permute.xlu0 %1780
        %1782 = vset.pattern.permute.xlu0 0
        %1783 = vperm.xlu0 %1782, %v1658
        %v1784 = vpop.permute.xlu0 %1783
        %1785 = vset.pattern.permute.xlu0 0
        %1786 = vperm.xlu0 %1785, %v1660
        %v1787 = vpop.permute.xlu0 %1786
        %1788 = vset.pattern.permute.xlu0 0
        %1789 = vperm.xlu0 %1788, %v1662
        %v1790 = vpop.permute.xlu0 %1789
        %v1791 = vlaneseq
        %v1792 = vshrl.u32 %v1791, 7
        %v1793 = vsub.s32 %v1222, %v1792
        %v1794 = vrot.slane %v1697, %v1793
        %v1795 = vlaneseq
        %v1796 = vshrl.u32 %v1795, 7
        %v1797 = vsub.s32 %v1222, %v1796
        %v1798 = vrot.slane %v1700, %v1797
        %v1799 = vlaneseq
        %v1800 = vshrl.u32 %v1799, 7
        %v1801 = vsub.s32 %v1222, %v1800
        %v1802 = vrot.slane %v1703, %v1801
        %v1803 = vlaneseq
        %v1804 = vshrl.u32 %v1803, 7
        %v1805 = vsub.s32 %v1222, %v1804
        %v1806 = vrot.slane %v1706, %v1805
        %v1807 = vlaneseq
        %v1808 = vshrl.u32 %v1807, 7
        %v1809 = vsub.s32 %v1222, %v1808
        %v1810 = vrot.slane %v1709, %v1809
        %v1811 = vlaneseq
        %v1812 = vshrl.u32 %v1811, 7
        %v1813 = vsub.s32 %v1222, %v1812
        %v1814 = vrot.slane %v1712, %v1813
        %v1815 = vlaneseq
        %v1816 = vshrl.u32 %v1815, 7
        %v1817 = vsub.s32 %v1222, %v1816
        %v1818 = vrot.slane %v1715, %v1817
        %v1819 = vlaneseq
        %v1820 = vshrl.u32 %v1819, 7
        %v1821 = vsub.s32 %v1222, %v1820
        %v1822 = vrot.slane %v1718, %v1821
        %v1823 = vlaneseq
        %v1824 = vshrl.u32 %v1823, 7
        %v1825 = vsub.s32 %v1222, %v1824
        %v1826 = vrot.slane %v1721, %v1825
        %v1827 = vlaneseq
        %v1828 = vshrl.u32 %v1827, 7
        %v1829 = vsub.s32 %v1222, %v1828
        %v1830 = vrot.slane %v1724, %v1829
        %v1831 = vlaneseq
        %v1832 = vshrl.u32 %v1831, 7
        %v1833 = vsub.s32 %v1222, %v1832
        %v1834 = vrot.slane %v1727, %v1833
        %v1835 = vlaneseq
        %v1836 = vshrl.u32 %v1835, 7
        %v1837 = vsub.s32 %v1222, %v1836
        %v1838 = vrot.slane %v1730, %v1837
        %v1839 = vlaneseq
        %v1840 = vshrl.u32 %v1839, 7
        %v1841 = vsub.s32 %v1222, %v1840
        %v1842 = vrot.slane %v1733, %v1841
        %v1843 = vlaneseq
        %v1844 = vshrl.u32 %v1843, 7
        %v1845 = vsub.s32 %v1222, %v1844
        %v1846 = vrot.slane %v1736, %v1845
        %v1847 = vlaneseq
        %v1848 = vshrl.u32 %v1847, 7
        %v1849 = vsub.s32 %v1222, %v1848
        %v1850 = vrot.slane %v1739, %v1849
        %v1851 = vlaneseq
        %v1852 = vshrl.u32 %v1851, 7
        %v1853 = vsub.s32 %v1222, %v1852
        %v1854 = vrot.slane %v1742, %v1853
        %v1855 = vlaneseq
        %v1856 = vshrl.u32 %v1855, 7
        %v1857 = vsub.s32 %v1222, %v1856
        %v1858 = vrot.slane %v1745, %v1857
        %v1859 = vlaneseq
        %v1860 = vshrl.u32 %v1859, 7
        %v1861 = vsub.s32 %v1222, %v1860
        %v1862 = vrot.slane %v1748, %v1861
        %v1863 = vlaneseq
        %v1864 = vshrl.u32 %v1863, 7
        %v1865 = vsub.s32 %v1222, %v1864
        %v1866 = vrot.slane %v1751, %v1865
        %v1867 = vlaneseq
        %v1868 = vshrl.u32 %v1867, 7
        %v1869 = vsub.s32 %v1222, %v1868
        %v1870 = vrot.slane %v1754, %v1869
        %v1871 = vlaneseq
        %v1872 = vshrl.u32 %v1871, 7
        %v1873 = vsub.s32 %v1222, %v1872
        %v1874 = vrot.slane %v1757, %v1873
        %v1875 = vlaneseq
        %v1876 = vshrl.u32 %v1875, 7
        %v1877 = vsub.s32 %v1222, %v1876
        %v1878 = vrot.slane %v1760, %v1877
        %v1879 = vlaneseq
        %v1880 = vshrl.u32 %v1879, 7
        %v1881 = vsub.s32 %v1222, %v1880
        %v1882 = vrot.slane %v1763, %v1881
        %v1883 = vlaneseq
        %v1884 = vshrl.u32 %v1883, 7
        %v1885 = vsub.s32 %v1222, %v1884
        %v1886 = vrot.slane %v1766, %v1885
        %v1887 = vlaneseq
        %v1888 = vshrl.u32 %v1887, 7
        %v1889 = vsub.s32 %v1222, %v1888
        %v1890 = vrot.slane %v1769, %v1889
        %v1891 = vlaneseq
        %v1892 = vshrl.u32 %v1891, 7
        %v1893 = vsub.s32 %v1222, %v1892
        %v1894 = vrot.slane %v1772, %v1893
        %v1895 = vlaneseq
        %v1896 = vshrl.u32 %v1895, 7
        %v1897 = vsub.s32 %v1222, %v1896
        %v1898 = vrot.slane %v1775, %v1897
        %v1899 = vlaneseq
        %v1900 = vshrl.u32 %v1899, 7
        %v1901 = vsub.s32 %v1222, %v1900
        %v1902 = vrot.slane %v1778, %v1901
        %v1903 = vlaneseq
        %v1904 = vshrl.u32 %v1903, 7
        %v1905 = vsub.s32 %v1222, %v1904
        %v1906 = vrot.slane %v1781, %v1905
        %v1907 = vlaneseq
        %v1908 = vshrl.u32 %v1907, 7
        %v1909 = vsub.s32 %v1222, %v1908
        %v1910 = vrot.slane %v1784, %v1909
        %v1911 = vlaneseq
        %v1912 = vshrl.u32 %v1911, 7
        %v1913 = vsub.s32 %v1222, %v1912
        %v1914 = vrot.slane %v1787, %v1913
        %v1915 = vlaneseq
        %v1916 = vshrl.u32 %v1915, 7
        %v1917 = vsub.s32 %v1222, %v1916
        %v1918 = vrot.slane %v1790, %v1917
        %v1919 = vsel %vm1351, %v1798, %v1794
        %v1920 = vsel %vm1353, %v1802, %v1919
        %v1921 = vsel %vm1355, %v1806, %v1920
        %v1922 = vsel %vm1357, %v1810, %v1921
        %v1923 = vsel %vm1359, %v1814, %v1922
        %v1924 = vsel %vm1361, %v1818, %v1923
        %v1925 = vsel %vm1363, %v1822, %v1924
        %v1926 = vsel %vm1351, %v1830, %v1826
        %v1927 = vsel %vm1353, %v1834, %v1926
        %v1928 = vsel %vm1355, %v1838, %v1927
        %v1929 = vsel %vm1357, %v1842, %v1928
        %v1930 = vsel %vm1359, %v1846, %v1929
        %v1931 = vsel %vm1361, %v1850, %v1930
        %v1932 = vsel %vm1363, %v1854, %v1931
        %v1933 = vsel %vm1351, %v1862, %v1858
        %v1934 = vsel %vm1353, %v1866, %v1933
        %v1935 = vsel %vm1355, %v1870, %v1934
        %v1936 = vsel %vm1357, %v1874, %v1935
        %v1937 = vsel %vm1359, %v1878, %v1936
        %v1938 = vsel %vm1361, %v1882, %v1937
        %v1939 = vsel %vm1363, %v1886, %v1938
        %v1940 = vsel %vm1351, %v1894, %v1890
        %v1941 = vsel %vm1353, %v1898, %v1940
        %v1942 = vsel %vm1355, %v1902, %v1941
        %v1943 = vsel %vm1357, %v1906, %v1942
        %v1944 = vsel %vm1359, %v1910, %v1943
        %v1945 = vsel %vm1361, %v1914, %v1944
        %v1946 = vsel %vm1363, %v1918, %v1945
        %v1951 = vsel %vm1390, %v1925, 0.0
        %1952 = vadd.xlane.f32.xlu0 %v1951
        %v1953 = vpop.xlane.xlu0 %1952
        %v1954 = vsel %vm1390, %v1932, 0.0
        %1955 = vadd.xlane.f32.xlu0 %v1954
        %v1956 = vpop.xlane.xlu0 %1955
        %v1957 = vsel %vm1390, %v1939, 0.0
        %1958 = vadd.xlane.f32.xlu0 %v1957
        %v1959 = vpop.xlane.xlu0 %1958
        %v1960 = vsel %vm1390, %v1946, 0.0
        %1961 = vadd.xlane.f32.xlu0 %v1960
        %v1962 = vpop.xlane.xlu0 %1961
        %v1963 = vrcp.pop %v1953
        %v1964 = vrcp.pop %v1956
        %v1965 = vrcp.pop %v1959
        %v1966 = vrcp.pop %v1962
        %v1971 = vlaneseq
        %v1972 = vshrl.u32 %v1971, 7
        %v1973 = vsub.s32 0, %v1972
        %v1974 = vrot.slane %v1963, %v1973
        %v1975 = vlaneseq
        %v1976 = vshrl.u32 %v1975, 7
        %v1977 = vsub.s32 1, %v1976
        %v1978 = vrot.slane %v1963, %v1977
        %v1979 = vlaneseq
        %v1980 = vshrl.u32 %v1979, 7
        %v1981 = vsub.s32 2, %v1980
        %v1982 = vrot.slane %v1963, %v1981
        %v1983 = vlaneseq
        %v1984 = vshrl.u32 %v1983, 7
        %v1985 = vsub.s32 3, %v1984
        %v1986 = vrot.slane %v1963, %v1985
        %v1987 = vlaneseq
        %v1988 = vshrl.u32 %v1987, 7
        %v1989 = vsub.s32 4, %v1988
        %v1990 = vrot.slane %v1963, %v1989
        %v1991 = vlaneseq
        %v1992 = vshrl.u32 %v1991, 7
        %v1993 = vsub.s32 5, %v1992
        %v1994 = vrot.slane %v1963, %v1993
        %v1995 = vlaneseq
        %v1996 = vshrl.u32 %v1995, 7
        %v1997 = vsub.s32 6, %v1996
        %v1998 = vrot.slane %v1963, %v1997
        %v1999 = vlaneseq
        %v2000 = vshrl.u32 %v1999, 7
        %v2001 = vsub.s32 7, %v2000
        %v2002 = vrot.slane %v1963, %v2001
        %v2003 = vlaneseq
        %v2004 = vshrl.u32 %v2003, 7
        %v2005 = vsub.s32 0, %v2004
        %v2006 = vrot.slane %v1964, %v2005
        %v2007 = vlaneseq
        %v2008 = vshrl.u32 %v2007, 7
        %v2009 = vsub.s32 1, %v2008
        %v2010 = vrot.slane %v1964, %v2009
        %v2011 = vlaneseq
        %v2012 = vshrl.u32 %v2011, 7
        %v2013 = vsub.s32 2, %v2012
        %v2014 = vrot.slane %v1964, %v2013
        %v2015 = vlaneseq
        %v2016 = vshrl.u32 %v2015, 7
        %v2017 = vsub.s32 3, %v2016
        %v2018 = vrot.slane %v1964, %v2017
        %v2019 = vlaneseq
        %v2020 = vshrl.u32 %v2019, 7
        %v2021 = vsub.s32 4, %v2020
        %v2022 = vrot.slane %v1964, %v2021
        %v2023 = vlaneseq
        %v2024 = vshrl.u32 %v2023, 7
        %v2025 = vsub.s32 5, %v2024
        %v2026 = vrot.slane %v1964, %v2025
        %v2027 = vlaneseq
        %v2028 = vshrl.u32 %v2027, 7
        %v2029 = vsub.s32 6, %v2028
        %v2030 = vrot.slane %v1964, %v2029
        %v2031 = vlaneseq
        %v2032 = vshrl.u32 %v2031, 7
        %v2033 = vsub.s32 7, %v2032
        %v2034 = vrot.slane %v1964, %v2033
        %v2035 = vlaneseq
        %v2036 = vshrl.u32 %v2035, 7
        %v2037 = vsub.s32 0, %v2036
        %v2038 = vrot.slane %v1965, %v2037
        %v2039 = vlaneseq
        %v2040 = vshrl.u32 %v2039, 7
        %v2041 = vsub.s32 1, %v2040
        %v2042 = vrot.slane %v1965, %v2041
        %v2043 = vlaneseq
        %v2044 = vshrl.u32 %v2043, 7
        %v2045 = vsub.s32 2, %v2044
        %v2046 = vrot.slane %v1965, %v2045
        %v2047 = vlaneseq
        %v2048 = vshrl.u32 %v2047, 7
        %v2049 = vsub.s32 3, %v2048
        %v2050 = vrot.slane %v1965, %v2049
        %v2051 = vlaneseq
        %v2052 = vshrl.u32 %v2051, 7
        %v2053 = vsub.s32 4, %v2052
        %v2054 = vrot.slane %v1965, %v2053
        %v2055 = vlaneseq
        %v2056 = vshrl.u32 %v2055, 7
        %v2057 = vsub.s32 5, %v2056
        %v2058 = vrot.slane %v1965, %v2057
        %v2059 = vlaneseq
        %v2060 = vshrl.u32 %v2059, 7
        %v2061 = vsub.s32 6, %v2060
        %v2062 = vrot.slane %v1965, %v2061
        %v2063 = vlaneseq
        %v2064 = vshrl.u32 %v2063, 7
        %v2065 = vsub.s32 7, %v2064
        %v2066 = vrot.slane %v1965, %v2065
        %v2067 = vlaneseq
        %v2068 = vshrl.u32 %v2067, 7
        %v2069 = vsub.s32 0, %v2068
        %v2070 = vrot.slane %v1966, %v2069
        %v2071 = vlaneseq
        %v2072 = vshrl.u32 %v2071, 7
        %v2073 = vsub.s32 1, %v2072
        %v2074 = vrot.slane %v1966, %v2073
        %v2075 = vlaneseq
        %v2076 = vshrl.u32 %v2075, 7
        %v2077 = vsub.s32 2, %v2076
        %v2078 = vrot.slane %v1966, %v2077
        %v2079 = vlaneseq
        %v2080 = vshrl.u32 %v2079, 7
        %v2081 = vsub.s32 3, %v2080
        %v2082 = vrot.slane %v1966, %v2081
        %v2083 = vlaneseq
        %v2084 = vshrl.u32 %v2083, 7
        %v2085 = vsub.s32 4, %v2084
        %v2086 = vrot.slane %v1966, %v2085
        %v2087 = vlaneseq
        %v2088 = vshrl.u32 %v2087, 7
        %v2089 = vsub.s32 5, %v2088
        %v2090 = vrot.slane %v1966, %v2089
        %v2091 = vlaneseq
        %v2092 = vshrl.u32 %v2091, 7
        %v2093 = vsub.s32 6, %v2092
        %v2094 = vrot.slane %v1966, %v2093
        %v2095 = vlaneseq
        %v2096 = vshrl.u32 %v2095, 7
        %v2097 = vsub.s32 7, %v2096
        %v2098 = vrot.slane %v1966, %v2097
        %v2131 = vmul.f32 %v1600, %v1974
        %v2132 = vmul.f32 %v1602, %v1978
        %v2133 = vmul.f32 %v1604, %v1982
        %v2134 = vmul.f32 %v1606, %v1986
        %v2135 = vmul.f32 %v1608, %v1990
        %v2136 = vmul.f32 %v1610, %v1994
        %v2137 = vmul.f32 %v1612, %v1998
        %v2138 = vmul.f32 %v1614, %v2002
        %v2139 = vmul.f32 %v1616, %v2006
        %v2140 = vmul.f32 %v1618, %v2010
        %v2141 = vmul.f32 %v1620, %v2014
        %v2142 = vmul.f32 %v1622, %v2018
        %v2143 = vmul.f32 %v1624, %v2022
        %v2144 = vmul.f32 %v1626, %v2026
        %v2145 = vmul.f32 %v1628, %v2030
        %v2146 = vmul.f32 %v1630, %v2034
        %v2147 = vmul.f32 %v1632, %v2038
        %v2148 = vmul.f32 %v1634, %v2042
        %v2149 = vmul.f32 %v1636, %v2046
        %v2150 = vmul.f32 %v1638, %v2050
        %v2151 = vmul.f32 %v1640, %v2054
        %v2152 = vmul.f32 %v1642, %v2058
        %v2153 = vmul.f32 %v1644, %v2062
        %v2154 = vmul.f32 %v1646, %v2066
        %v2155 = vmul.f32 %v1648, %v2070
        %v2156 = vmul.f32 %v1650, %v2074
        %v2157 = vmul.f32 %v1652, %v2078
        %v2158 = vmul.f32 %v1654, %v2082
        %v2159 = vmul.f32 %v1656, %v2086
        %v2160 = vmul.f32 %v1658, %v2090
        %v2161 = vmul.f32 %v1660, %v2094
        %v2162 = vmul.f32 %v1662, %v2098
        %2195 = vset.pattern.permute.xlu0 0
        %2196 = vperm.xlu0 %2195, %v2131
        %v2197 = vpop.permute.xlu0 %2196
        %2198 = vset.pattern.permute.xlu0 0
        %2199 = vperm.xlu0 %2198, %v2132
        %v2200 = vpop.permute.xlu0 %2199
        %2201 = vset.pattern.permute.xlu0 0
        %2202 = vperm.xlu0 %2201, %v2133
        %v2203 = vpop.permute.xlu0 %2202
        %2204 = vset.pattern.permute.xlu0 0
        %2205 = vperm.xlu0 %2204, %v2134
        %v2206 = vpop.permute.xlu0 %2205
        %2207 = vset.pattern.permute.xlu0 0
        %2208 = vperm.xlu0 %2207, %v2135
        %v2209 = vpop.permute.xlu0 %2208
        %2210 = vset.pattern.permute.xlu0 0
        %2211 = vperm.xlu0 %2210, %v2136
        %v2212 = vpop.permute.xlu0 %2211
        %2213 = vset.pattern.permute.xlu0 0
        %2214 = vperm.xlu0 %2213, %v2137
        %v2215 = vpop.permute.xlu0 %2214
        %2216 = vset.pattern.permute.xlu0 0
        %2217 = vperm.xlu0 %2216, %v2138
        %v2218 = vpop.permute.xlu0 %2217
        %2219 = vset.pattern.permute.xlu0 0
        %2220 = vperm.xlu0 %2219, %v2139
        %v2221 = vpop.permute.xlu0 %2220
        %2222 = vset.pattern.permute.xlu0 0
        %2223 = vperm.xlu0 %2222, %v2140
        %v2224 = vpop.permute.xlu0 %2223
        %2225 = vset.pattern.permute.xlu0 0
        %2226 = vperm.xlu0 %2225, %v2141
        %v2227 = vpop.permute.xlu0 %2226
        %2228 = vset.pattern.permute.xlu0 0
        %2229 = vperm.xlu0 %2228, %v2142
        %v2230 = vpop.permute.xlu0 %2229
        %2231 = vset.pattern.permute.xlu0 0
        %2232 = vperm.xlu0 %2231, %v2143
        %v2233 = vpop.permute.xlu0 %2232
        %2234 = vset.pattern.permute.xlu0 0
        %2235 = vperm.xlu0 %2234, %v2144
        %v2236 = vpop.permute.xlu0 %2235
        %2237 = vset.pattern.permute.xlu0 0
        %2238 = vperm.xlu0 %2237, %v2145
        %v2239 = vpop.permute.xlu0 %2238
        %2240 = vset.pattern.permute.xlu0 0
        %2241 = vperm.xlu0 %2240, %v2146
        %v2242 = vpop.permute.xlu0 %2241
        %2243 = vset.pattern.permute.xlu0 0
        %2244 = vperm.xlu0 %2243, %v2147
        %v2245 = vpop.permute.xlu0 %2244
        %2246 = vset.pattern.permute.xlu0 0
        %2247 = vperm.xlu0 %2246, %v2148
        %v2248 = vpop.permute.xlu0 %2247
        %2249 = vset.pattern.permute.xlu0 0
        %2250 = vperm.xlu0 %2249, %v2149
        %v2251 = vpop.permute.xlu0 %2250
        %2252 = vset.pattern.permute.xlu0 0
        %2253 = vperm.xlu0 %2252, %v2150
        %v2254 = vpop.permute.xlu0 %2253
        %2255 = vset.pattern.permute.xlu0 0
        %2256 = vperm.xlu0 %2255, %v2151
        %v2257 = vpop.permute.xlu0 %2256
        %2258 = vset.pattern.permute.xlu0 0
        %2259 = vperm.xlu0 %2258, %v2152
        %v2260 = vpop.permute.xlu0 %2259
        %2261 = vset.pattern.permute.xlu0 0
        %2262 = vperm.xlu0 %2261, %v2153
        %v2263 = vpop.permute.xlu0 %2262
        %2264 = vset.pattern.permute.xlu0 0
        %2265 = vperm.xlu0 %2264, %v2154
        %v2266 = vpop.permute.xlu0 %2265
        %2267 = vset.pattern.permute.xlu0 0
        %2268 = vperm.xlu0 %2267, %v2155
        %v2269 = vpop.permute.xlu0 %2268
        %2270 = vset.pattern.permute.xlu0 0
        %2271 = vperm.xlu0 %2270, %v2156
        %v2272 = vpop.permute.xlu0 %2271
        %2273 = vset.pattern.permute.xlu0 0
        %2274 = vperm.xlu0 %2273, %v2157
        %v2275 = vpop.permute.xlu0 %2274
        %2276 = vset.pattern.permute.xlu0 0
        %2277 = vperm.xlu0 %2276, %v2158
        %v2278 = vpop.permute.xlu0 %2277
        %2279 = vset.pattern.permute.xlu0 0
        %2280 = vperm.xlu0 %2279, %v2159
        %v2281 = vpop.permute.xlu0 %2280
        %2282 = vset.pattern.permute.xlu0 0
        %2283 = vperm.xlu0 %2282, %v2160
        %v2284 = vpop.permute.xlu0 %2283
        %2285 = vset.pattern.permute.xlu0 0
        %2286 = vperm.xlu0 %2285, %v2161
        %v2287 = vpop.permute.xlu0 %2286
        %2288 = vset.pattern.permute.xlu0 0
        %2289 = vperm.xlu0 %2288, %v2162
        %v2290 = vpop.permute.xlu0 %2289
        %v2291 = vlaneseq
        %v2292 = vshrl.u32 %v2291, 7
        %v2293 = vsub.s32 %v1222, %v2292
        %v2294 = vrot.slane %v2197, %v2293
        %v2295 = vlaneseq
        %v2296 = vshrl.u32 %v2295, 7
        %v2297 = vsub.s32 %v1222, %v2296
        %v2298 = vrot.slane %v2200, %v2297
        %v2299 = vlaneseq
        %v2300 = vshrl.u32 %v2299, 7
        %v2301 = vsub.s32 %v1222, %v2300
        %v2302 = vrot.slane %v2203, %v2301
        %v2303 = vlaneseq
        %v2304 = vshrl.u32 %v2303, 7
        %v2305 = vsub.s32 %v1222, %v2304
        %v2306 = vrot.slane %v2206, %v2305
        %v2307 = vlaneseq
        %v2308 = vshrl.u32 %v2307, 7
        %v2309 = vsub.s32 %v1222, %v2308
        %v2310 = vrot.slane %v2209, %v2309
        %v2311 = vlaneseq
        %v2312 = vshrl.u32 %v2311, 7
        %v2313 = vsub.s32 %v1222, %v2312
        %v2314 = vrot.slane %v2212, %v2313
        %v2315 = vlaneseq
        %v2316 = vshrl.u32 %v2315, 7
        %v2317 = vsub.s32 %v1222, %v2316
        %v2318 = vrot.slane %v2215, %v2317
        %v2319 = vlaneseq
        %v2320 = vshrl.u32 %v2319, 7
        %v2321 = vsub.s32 %v1222, %v2320
        %v2322 = vrot.slane %v2218, %v2321
        %v2323 = vlaneseq
        %v2324 = vshrl.u32 %v2323, 7
        %v2325 = vsub.s32 %v1222, %v2324
        %v2326 = vrot.slane %v2221, %v2325
        %v2327 = vlaneseq
        %v2328 = vshrl.u32 %v2327, 7
        %v2329 = vsub.s32 %v1222, %v2328
        %v2330 = vrot.slane %v2224, %v2329
        %v2331 = vlaneseq
        %v2332 = vshrl.u32 %v2331, 7
        %v2333 = vsub.s32 %v1222, %v2332
        %v2334 = vrot.slane %v2227, %v2333
        %v2335 = vlaneseq
        %v2336 = vshrl.u32 %v2335, 7
        %v2337 = vsub.s32 %v1222, %v2336
        %v2338 = vrot.slane %v2230, %v2337
        %v2339 = vlaneseq
        %v2340 = vshrl.u32 %v2339, 7
        %v2341 = vsub.s32 %v1222, %v2340
        %v2342 = vrot.slane %v2233, %v2341
        %v2343 = vlaneseq
        %v2344 = vshrl.u32 %v2343, 7
        %v2345 = vsub.s32 %v1222, %v2344
        %v2346 = vrot.slane %v2236, %v2345
        %v2347 = vlaneseq
        %v2348 = vshrl.u32 %v2347, 7
        %v2349 = vsub.s32 %v1222, %v2348
        %v2350 = vrot.slane %v2239, %v2349
        %v2351 = vlaneseq
        %v2352 = vshrl.u32 %v2351, 7
        %v2353 = vsub.s32 %v1222, %v2352
        %v2354 = vrot.slane %v2242, %v2353
        %v2355 = vlaneseq
        %v2356 = vshrl.u32 %v2355, 7
        %v2357 = vsub.s32 %v1222, %v2356
        %v2358 = vrot.slane %v2245, %v2357
        %v2359 = vlaneseq
        %v2360 = vshrl.u32 %v2359, 7
        %v2361 = vsub.s32 %v1222, %v2360
        %v2362 = vrot.slane %v2248, %v2361
        %v2363 = vlaneseq
        %v2364 = vshrl.u32 %v2363, 7
        %v2365 = vsub.s32 %v1222, %v2364
        %v2366 = vrot.slane %v2251, %v2365
        %v2367 = vlaneseq
        %v2368 = vshrl.u32 %v2367, 7
        %v2369 = vsub.s32 %v1222, %v2368
        %v2370 = vrot.slane %v2254, %v2369
        %v2371 = vlaneseq
        %v2372 = vshrl.u32 %v2371, 7
        %v2373 = vsub.s32 %v1222, %v2372
        %v2374 = vrot.slane %v2257, %v2373
        %v2375 = vlaneseq
        %v2376 = vshrl.u32 %v2375, 7
        %v2377 = vsub.s32 %v1222, %v2376
        %v2378 = vrot.slane %v2260, %v2377
        %v2379 = vlaneseq
        %v2380 = vshrl.u32 %v2379, 7
        %v2381 = vsub.s32 %v1222, %v2380
        %v2382 = vrot.slane %v2263, %v2381
        %v2383 = vlaneseq
        %v2384 = vshrl.u32 %v2383, 7
        %v2385 = vsub.s32 %v1222, %v2384
        %v2386 = vrot.slane %v2266, %v2385
        %v2387 = vlaneseq
        %v2388 = vshrl.u32 %v2387, 7
        %v2389 = vsub.s32 %v1222, %v2388
        %v2390 = vrot.slane %v2269, %v2389
        %v2391 = vlaneseq
        %v2392 = vshrl.u32 %v2391, 7
        %v2393 = vsub.s32 %v1222, %v2392
        %v2394 = vrot.slane %v2272, %v2393
        %v2395 = vlaneseq
        %v2396 = vshrl.u32 %v2395, 7
        %v2397 = vsub.s32 %v1222, %v2396
        %v2398 = vrot.slane %v2275, %v2397
        %v2399 = vlaneseq
        %v2400 = vshrl.u32 %v2399, 7
        %v2401 = vsub.s32 %v1222, %v2400
        %v2402 = vrot.slane %v2278, %v2401
        %v2403 = vlaneseq
        %v2404 = vshrl.u32 %v2403, 7
        %v2405 = vsub.s32 %v1222, %v2404
        %v2406 = vrot.slane %v2281, %v2405
        %v2407 = vlaneseq
        %v2408 = vshrl.u32 %v2407, 7
        %v2409 = vsub.s32 %v1222, %v2408
        %v2410 = vrot.slane %v2284, %v2409
        %v2411 = vlaneseq
        %v2412 = vshrl.u32 %v2411, 7
        %v2413 = vsub.s32 %v1222, %v2412
        %v2414 = vrot.slane %v2287, %v2413
        %v2415 = vlaneseq
        %v2416 = vshrl.u32 %v2415, 7
        %v2417 = vsub.s32 %v1222, %v2416
        %v2418 = vrot.slane %v2290, %v2417
        %v2419 = vsel %vm1351, %v2298, %v2294
        %v2420 = vsel %vm1353, %v2302, %v2419
        %v2421 = vsel %vm1355, %v2306, %v2420
        %v2422 = vsel %vm1357, %v2310, %v2421
        %v2423 = vsel %vm1359, %v2314, %v2422
        %v2424 = vsel %vm1361, %v2318, %v2423
        %v2425 = vsel %vm1363, %v2322, %v2424
        %v2426 = vsel %vm1351, %v2330, %v2326
        %v2427 = vsel %vm1353, %v2334, %v2426
        %v2428 = vsel %vm1355, %v2338, %v2427
        %v2429 = vsel %vm1357, %v2342, %v2428
        %v2430 = vsel %vm1359, %v2346, %v2429
        %v2431 = vsel %vm1361, %v2350, %v2430
        %v2432 = vsel %vm1363, %v2354, %v2431
        %v2433 = vsel %vm1351, %v2362, %v2358
        %v2434 = vsel %vm1353, %v2366, %v2433
        %v2435 = vsel %vm1355, %v2370, %v2434
        %v2436 = vsel %vm1357, %v2374, %v2435
        %v2437 = vsel %vm1359, %v2378, %v2436
        %v2438 = vsel %vm1361, %v2382, %v2437
        %v2439 = vsel %vm1363, %v2386, %v2438
        %v2440 = vsel %vm1351, %v2394, %v2390
        %v2441 = vsel %vm1353, %v2398, %v2440
        %v2442 = vsel %vm1355, %v2402, %v2441
        %v2443 = vsel %vm1357, %v2406, %v2442
        %v2444 = vsel %vm1359, %v2410, %v2443
        %v2445 = vsel %vm1361, %v2414, %v2444
        %v2446 = vsel %vm1363, %v2418, %v2445
        %2451 = vst.msk [vmem:[%s341] sm:$0xff] %vm1390, %v2425
        %2452 = vst.msk [vmem:[%s341 + $0x8] sm:$0xff] %vm1390, %v2432
        %2453 = vst.msk [vmem:[%s341 + $0x10] sm:$0xff] %vm1390, %v2439
        %2454 = vst.msk [vmem:[%s341 + $0x18] sm:$0xff] %vm1390, %v2446
        %v2487 = vmul.f32 %v2197, %v343
        %v2488 = vmul.f32 %v2200, %v344
        %v2489 = vmul.f32 %v2203, %v345
        %v2490 = vmul.f32 %v2206, %v346
        %v2491 = vmul.f32 %v2209, %v347
        %v2492 = vmul.f32 %v2212, %v348
        %v2493 = vmul.f32 %v2215, %v349
        %v2494 = vmul.f32 %v2218, %v350
        %v2495 = vmul.f32 %v2221, %v351
        %v2496 = vmul.f32 %v2224, %v352
        %v2497 = vmul.f32 %v2227, %v353
        %v2498 = vmul.f32 %v2230, %v354
        %v2499 = vmul.f32 %v2233, %v355
        %v2500 = vmul.f32 %v2236, %v356
        %v2501 = vmul.f32 %v2239, %v357
        %v2502 = vmul.f32 %v2242, %v358
        %v2503 = vmul.f32 %v2245, %v359
        %v2504 = vmul.f32 %v2248, %v360
        %v2505 = vmul.f32 %v2251, %v361
        %v2506 = vmul.f32 %v2254, %v362
        %v2507 = vmul.f32 %v2257, %v363
        %v2508 = vmul.f32 %v2260, %v364
        %v2509 = vmul.f32 %v2263, %v365
        %v2510 = vmul.f32 %v2266, %v366
        %v2511 = vmul.f32 %v2269, %v367
        %v2512 = vmul.f32 %v2272, %v368
        %v2513 = vmul.f32 %v2275, %v369
        %v2514 = vmul.f32 %v2278, %v370
        %v2515 = vmul.f32 %v2281, %v371
        %v2516 = vmul.f32 %v2284, %v372
        %v2517 = vmul.f32 %v2287, %v373
        %v2518 = vmul.f32 %v2290, %v374
        %v2519 = vrot.slane %v2487, 4
        %v2520 = vadd.f32 %v2487, %v2519
        %v2521 = vrot.slane %v2520, 2
        %v2522 = vadd.f32 %v2520, %v2521
        %v2523 = vrot.slane %v2522, 1
        %v2524 = vadd.f32 %v2522, %v2523
        %v2525 = vrot.slane %v2488, 4
        %v2526 = vadd.f32 %v2488, %v2525
        %v2527 = vrot.slane %v2526, 2
        %v2528 = vadd.f32 %v2526, %v2527
        %v2529 = vrot.slane %v2528, 1
        %v2530 = vadd.f32 %v2528, %v2529
        %v2531 = vrot.slane %v2489, 4
        %v2532 = vadd.f32 %v2489, %v2531
        %v2533 = vrot.slane %v2532, 2
        %v2534 = vadd.f32 %v2532, %v2533
        %v2535 = vrot.slane %v2534, 1
        %v2536 = vadd.f32 %v2534, %v2535
        %v2537 = vrot.slane %v2490, 4
        %v2538 = vadd.f32 %v2490, %v2537
        %v2539 = vrot.slane %v2538, 2
        %v2540 = vadd.f32 %v2538, %v2539
        %v2541 = vrot.slane %v2540, 1
        %v2542 = vadd.f32 %v2540, %v2541
        %v2543 = vrot.slane %v2491, 4
        %v2544 = vadd.f32 %v2491, %v2543
        %v2545 = vrot.slane %v2544, 2
        %v2546 = vadd.f32 %v2544, %v2545
        %v2547 = vrot.slane %v2546, 1
        %v2548 = vadd.f32 %v2546, %v2547
        %v2549 = vrot.slane %v2492, 4
        %v2550 = vadd.f32 %v2492, %v2549
        %v2551 = vrot.slane %v2550, 2
        %v2552 = vadd.f32 %v2550, %v2551
        %v2553 = vrot.slane %v2552, 1
        %v2554 = vadd.f32 %v2552, %v2553
        %v2555 = vrot.slane %v2493, 4
        %v2556 = vadd.f32 %v2493, %v2555
        %v2557 = vrot.slane %v2556, 2
        %v2558 = vadd.f32 %v2556, %v2557
        %v2559 = vrot.slane %v2558, 1
        %v2560 = vadd.f32 %v2558, %v2559
        %v2561 = vrot.slane %v2494, 4
        %v2562 = vadd.f32 %v2494, %v2561
        %v2563 = vrot.slane %v2562, 2
        %v2564 = vadd.f32 %v2562, %v2563
        %v2565 = vrot.slane %v2564, 1
        %v2566 = vadd.f32 %v2564, %v2565
        %v2567 = vrot.slane %v2495, 4
        %v2568 = vadd.f32 %v2495, %v2567
        %v2569 = vrot.slane %v2568, 2
        %v2570 = vadd.f32 %v2568, %v2569
        %v2571 = vrot.slane %v2570, 1
        %v2572 = vadd.f32 %v2570, %v2571
        %v2573 = vrot.slane %v2496, 4
        %v2574 = vadd.f32 %v2496, %v2573
        %v2575 = vrot.slane %v2574, 2
        %v2576 = vadd.f32 %v2574, %v2575
        %v2577 = vrot.slane %v2576, 1
        %v2578 = vadd.f32 %v2576, %v2577
        %v2579 = vrot.slane %v2497, 4
        %v2580 = vadd.f32 %v2497, %v2579
        %v2581 = vrot.slane %v2580, 2
        %v2582 = vadd.f32 %v2580, %v2581
        %v2583 = vrot.slane %v2582, 1
        %v2584 = vadd.f32 %v2582, %v2583
        %v2585 = vrot.slane %v2498, 4
        %v2586 = vadd.f32 %v2498, %v2585
        %v2587 = vrot.slane %v2586, 2
        %v2588 = vadd.f32 %v2586, %v2587
        %v2589 = vrot.slane %v2588, 1
        %v2590 = vadd.f32 %v2588, %v2589
        %v2591 = vrot.slane %v2499, 4
        %v2592 = vadd.f32 %v2499, %v2591
        %v2593 = vrot.slane %v2592, 2
        %v2594 = vadd.f32 %v2592, %v2593
        %v2595 = vrot.slane %v2594, 1
        %v2596 = vadd.f32 %v2594, %v2595
        %v2597 = vrot.slane %v2500, 4
        %v2598 = vadd.f32 %v2500, %v2597
        %v2599 = vrot.slane %v2598, 2
        %v2600 = vadd.f32 %v2598, %v2599
        %v2601 = vrot.slane %v2600, 1
        %v2602 = vadd.f32 %v2600, %v2601
        %v2603 = vrot.slane %v2501, 4
        %v2604 = vadd.f32 %v2501, %v2603
        %v2605 = vrot.slane %v2604, 2
        %v2606 = vadd.f32 %v2604, %v2605
        %v2607 = vrot.slane %v2606, 1
        %v2608 = vadd.f32 %v2606, %v2607
        %v2609 = vrot.slane %v2502, 4
        %v2610 = vadd.f32 %v2502, %v2609
        %v2611 = vrot.slane %v2610, 2
        %v2612 = vadd.f32 %v2610, %v2611
        %v2613 = vrot.slane %v2612, 1
        %v2614 = vadd.f32 %v2612, %v2613
        %v2615 = vrot.slane %v2503, 4
        %v2616 = vadd.f32 %v2503, %v2615
        %v2617 = vrot.slane %v2616, 2
        %v2618 = vadd.f32 %v2616, %v2617
        %v2619 = vrot.slane %v2618, 1
        %v2620 = vadd.f32 %v2618, %v2619
        %v2621 = vrot.slane %v2504, 4
        %v2622 = vadd.f32 %v2504, %v2621
        %v2623 = vrot.slane %v2622, 2
        %v2624 = vadd.f32 %v2622, %v2623
        %v2625 = vrot.slane %v2624, 1
        %v2626 = vadd.f32 %v2624, %v2625
        %v2627 = vrot.slane %v2505, 4
        %v2628 = vadd.f32 %v2505, %v2627
        %v2629 = vrot.slane %v2628, 2
        %v2630 = vadd.f32 %v2628, %v2629
        %v2631 = vrot.slane %v2630, 1
        %v2632 = vadd.f32 %v2630, %v2631
        %v2633 = vrot.slane %v2506, 4
        %v2634 = vadd.f32 %v2506, %v2633
        %v2635 = vrot.slane %v2634, 2
        %v2636 = vadd.f32 %v2634, %v2635
        %v2637 = vrot.slane %v2636, 1
        %v2638 = vadd.f32 %v2636, %v2637
        %v2639 = vrot.slane %v2507, 4
        %v2640 = vadd.f32 %v2507, %v2639
        %v2641 = vrot.slane %v2640, 2
        %v2642 = vadd.f32 %v2640, %v2641
        %v2643 = vrot.slane %v2642, 1
        %v2644 = vadd.f32 %v2642, %v2643
        %v2645 = vrot.slane %v2508, 4
        %v2646 = vadd.f32 %v2508, %v2645
        %v2647 = vrot.slane %v2646, 2
        %v2648 = vadd.f32 %v2646, %v2647
        %v2649 = vrot.slane %v2648, 1
        %v2650 = vadd.f32 %v2648, %v2649
        %v2651 = vrot.slane %v2509, 4
        %v2652 = vadd.f32 %v2509, %v2651
        %v2653 = vrot.slane %v2652, 2
        %v2654 = vadd.f32 %v2652, %v2653
        %v2655 = vrot.slane %v2654, 1
        %v2656 = vadd.f32 %v2654, %v2655
        %v2657 = vrot.slane %v2510, 4
        %v2658 = vadd.f32 %v2510, %v2657
        %v2659 = vrot.slane %v2658, 2
        %v2660 = vadd.f32 %v2658, %v2659
        %v2661 = vrot.slane %v2660, 1
        %v2662 = vadd.f32 %v2660, %v2661
        %v2663 = vrot.slane %v2511, 4
        %v2664 = vadd.f32 %v2511, %v2663
        %v2665 = vrot.slane %v2664, 2
        %v2666 = vadd.f32 %v2664, %v2665
        %v2667 = vrot.slane %v2666, 1
        %v2668 = vadd.f32 %v2666, %v2667
        %v2669 = vrot.slane %v2512, 4
        %v2670 = vadd.f32 %v2512, %v2669
        %v2671 = vrot.slane %v2670, 2
        %v2672 = vadd.f32 %v2670, %v2671
        %v2673 = vrot.slane %v2672, 1
        %v2674 = vadd.f32 %v2672, %v2673
        %v2675 = vrot.slane %v2513, 4
        %v2676 = vadd.f32 %v2513, %v2675
        %v2677 = vrot.slane %v2676, 2
        %v2678 = vadd.f32 %v2676, %v2677
        %v2679 = vrot.slane %v2678, 1
        %v2680 = vadd.f32 %v2678, %v2679
        %v2681 = vrot.slane %v2514, 4
        %v2682 = vadd.f32 %v2514, %v2681
        %v2683 = vrot.slane %v2682, 2
        %v2684 = vadd.f32 %v2682, %v2683
        %v2685 = vrot.slane %v2684, 1
        %v2686 = vadd.f32 %v2684, %v2685
        %v2687 = vrot.slane %v2515, 4
        %v2688 = vadd.f32 %v2515, %v2687
        %v2689 = vrot.slane %v2688, 2
        %v2690 = vadd.f32 %v2688, %v2689
        %v2691 = vrot.slane %v2690, 1
        %v2692 = vadd.f32 %v2690, %v2691
        %v2693 = vrot.slane %v2516, 4
        %v2694 = vadd.f32 %v2516, %v2693
        %v2695 = vrot.slane %v2694, 2
        %v2696 = vadd.f32 %v2694, %v2695
        %v2697 = vrot.slane %v2696, 1
        %v2698 = vadd.f32 %v2696, %v2697
        %v2699 = vrot.slane %v2517, 4
        %v2700 = vadd.f32 %v2517, %v2699
        %v2701 = vrot.slane %v2700, 2
        %v2702 = vadd.f32 %v2700, %v2701
        %v2703 = vrot.slane %v2702, 1
        %v2704 = vadd.f32 %v2702, %v2703
        %v2705 = vrot.slane %v2518, 4
        %v2706 = vadd.f32 %v2518, %v2705
        %v2707 = vrot.slane %v2706, 2
        %v2708 = vadd.f32 %v2706, %v2707
        %v2709 = vrot.slane %v2708, 1
        %v2710 = vadd.f32 %v2708, %v2709
        %v2743 = vsel %vm1351, %v2530, %v2524
        %v2744 = vsel %vm1353, %v2536, %v2743
        %v2745 = vsel %vm1355, %v2542, %v2744
        %v2746 = vsel %vm1357, %v2548, %v2745
        %v2747 = vsel %vm1359, %v2554, %v2746
        %v2748 = vsel %vm1361, %v2560, %v2747
        %v2749 = vsel %vm1363, %v2566, %v2748
        %v2750 = vsel %vm1351, %v2578, %v2572
        %v2751 = vsel %vm1353, %v2584, %v2750
        %v2752 = vsel %vm1355, %v2590, %v2751
        %v2753 = vsel %vm1357, %v2596, %v2752
        %v2754 = vsel %vm1359, %v2602, %v2753
        %v2755 = vsel %vm1361, %v2608, %v2754
        %v2756 = vsel %vm1363, %v2614, %v2755
        %v2757 = vsel %vm1351, %v2626, %v2620
        %v2758 = vsel %vm1353, %v2632, %v2757
        %v2759 = vsel %vm1355, %v2638, %v2758
        %v2760 = vsel %vm1357, %v2644, %v2759
        %v2761 = vsel %vm1359, %v2650, %v2760
        %v2762 = vsel %vm1361, %v2656, %v2761
        %v2763 = vsel %vm1363, %v2662, %v2762
        %v2764 = vsel %vm1351, %v2674, %v2668
        %v2765 = vsel %vm1353, %v2680, %v2764
        %v2766 = vsel %vm1355, %v2686, %v2765
        %v2767 = vsel %vm1357, %v2692, %v2766
        %v2768 = vsel %vm1359, %v2698, %v2767
        %v2769 = vsel %vm1361, %v2704, %v2768
        %v2770 = vsel %vm1363, %v2710, %v2769
        %2775 = vst [vmem:[%s326] sm:$0xff] %v2749
        %2776 = vst [vmem:[%s326 + $0x8] sm:$0xff] %v2756
        %2777 = vst [vmem:[%s326 + $0x10] sm:$0xff] %v2763
        %2778 = vst [vmem:[%s326 + $0x18] sm:$0xff] %v2770
        %s2779 = sand.u32 %s152, 1
        %s2780 = scalar_lea.sflag [#allocation5], %s2779
        %s2781 = sand.u32 %s152, 1
        %s2782 = smul.addr %s2781, 32
        %s2783 = scalar_lea.vmem [#allocation9], %s2782
        %s2784 = smul.u32 4, %s29
        %p2785 = scmp.lt.s32.totalorder %s2784, 7
        %s2786 = scalar_select %p2785, %s2784, 7
        %s2787 = smul.addr %s2786, 8
        %s2788 = scalar_lea.vmem %s6, %s2787
        // Predicated region
        $region53: #{tpu_custom_call.1} parent=39 // pred_check
          %p2789 = pneg %p162
        $region54: #{tpu_custom_call.1} parent=39 // pred_check_branch
          %2791 = sbr.rel (%p2789) target = $region56
        $region55: #{tpu_custom_call.1} parent=39 // pred_region
          %s2792 = smul.u32 4, %s29
          %s2794 = ssub.s32 512, 512
          %2795 = vsyncadd %s2780, %s2794
          %s2796 = smul.addr %s2792, 128
          %s2797 = scalar_lea.hbm %s5, %s2796
          %s2798 = sshll.u32 %s2783, 4
          %s2799 = int_to_ptr.vmem [resolvable:$true] %s2798
          %2804 = dma.vmem_to_hbm [thread:$0]  %s2799, 512, %s2797, %s2780, 128, 128, 8
        $region56: #{tpu_custom_call.1} parent=39 // pred_fallthru
          _
        // Predicated region
        $region57: #{tpu_custom_call.1} parent=39 // pred_check
          %p2805 = pneg %p188
        $region58: #{tpu_custom_call.1} parent=39 // pred_check_branch
          %2807 = sbr.rel (%p2805) target = $region60
        $region59: #{tpu_custom_call.1} parent=39 // pred_region
          %s2808 = smul.u32 4, %s29
        $region60: #{tpu_custom_call.1} parent=39 // pred_fallthru
          _
      $region40: #{tpu_custom_call.1} parent=5 // pred_fallthru
        _
      %p2809 = scmp.le.s32.totalorder 2, %s24
      // Predicated region
      $region61: #{tpu_custom_call.1} parent=5 // pred_check
        %p2810 = pneg %p2809
      $region62: #{tpu_custom_call.1} parent=5 // pred_check_branch
        %2812 = sbr.rel (%p2810) target = $region64
      $region63: #{tpu_custom_call.1} parent=5 // pred_region
        %s2813 = ssub.s32 %s24, 2
        // Predicated region
        $region65: #{tpu_custom_call.1} parent=63 // pred_check
          %p2814 = pneg %p168
        $region66: #{tpu_custom_call.1} parent=63 // pred_check_branch
          %2816 = sbr.rel (%p2814) target = $region68
        $region67: #{tpu_custom_call.1} parent=63 // pred_region
          %s2817 = sand.u32 %s153, 1
          %s2818 = scalar_lea.sflag [#allocation5], %s2817
          %s2819 = sand.u32 %s153, 1
          %s2820 = smul.addr %s2819, 32
          %s2821 = scalar_lea.vmem [#allocation9], %s2820
          %2822 = dma.done %s2818, 512
        $region68: #{tpu_custom_call.1} parent=63 // pred_fallthru
          _
        // Predicated region
        $region69: #{tpu_custom_call.1} parent=63 // pred_check
          %p2823 = pneg %p194
        $region70: #{tpu_custom_call.1} parent=63 // pred_check_branch
          %2825 = sbr.rel (%p2823) target = $region72
        $region71: #{tpu_custom_call.1} parent=63 // pred_region
          %s2826 = smul.u32 4, %s30
          %p2827 = scmp.lt.s32.totalorder %s2826, 7
          %s2828 = scalar_select %p2827, %s2826, 7
          %s2829 = smul.addr %s2828, 8
          %s2830 = scalar_lea.vmem %s6, %s2829
        $region72: #{tpu_custom_call.1} parent=63 // pred_fallthru
          _
      $region64: #{tpu_custom_call.1} parent=5 // pred_fallthru
        _
    $region6: #{tpu_custom_call.1} parent=1 // loop_footer
      %s28 = sadd.s32 1, %s24
    $region7: #{tpu_custom_call.1} parent=1 // loop_footer_branch
      %23 = sbr.rel target = $region3
    $region8: #{tpu_custom_call.1} parent=1 // loop_exit
      _
    %2831 = vsyncpa [#allocation4], 1
    %s2832 = scalar_lea.sflag [#allocation4], 1
    %2833 = vsyncpa %s2832, 1
    %2834 = vsyncpa [#allocation7], 1
    %s2835 = scalar_lea.sflag [#allocation7], 1
    %2836 = vsyncpa %s2835, 1
    %2837 = vsyncpa [#allocation5], 1
    %s2838 = scalar_lea.sflag [#allocation5], 1
    %2839 = vsyncpa %s2838, 1

</llo_original>
